<compile_context>
chip_gen: v7x
topology: tpu7x:2x2x1
jax: 0.10.0
libtpu: 0.0.40
codegen_flags: <defaults>
</compile_context>

<pallas_src>
import jax
import jax.numpy as jnp
from jax import lax
from jax.experimental import pallas as pl
from jax.experimental.pallas import tpu as pltpu


def _round_up(x, m):
    return ((x + m - 1) // m) * m


def conv_block_kernel(x_ref, w1_ref, s1_ref, b1_ref, w2_ref, s2_ref, b2_ref,
                      o_ref, hbuf_ref):
    """One batch element per grid step.

    x_ref:  (1, H, W, C)        input tile (NHWC), f32
    w1_ref: (C, 2C)             1x1 conv weight (in, out), bf16
    s1/b1:  (1, 2C)             folded BN1 scale / bias (conv1 bias included), f32
    w2_ref: (9*2C, C)           3x3 conv weight, flattened (dx, dy, in) x out, bf16
    s2/b2:  (1, C)              folded BN2 scale / bias (conv2 bias included), f32
    o_ref:  (1, H, W, C)        output tile (NHWC), f32
    hbuf_ref: (H+2, Wq, 2C)     persistent VMEM scratch, f32.
        Row r holds conceptual padded row r (row 0 / H+1 are the zero halo),
        columns 0..W-1 hold the payload (aligned at sublane 0), columns
        W..Wq-1 are zeros and double (via roll wrap-around) as the left halo.
    """
    _, H, W, C = x_ref.shape
    _, Wq, C2 = hbuf_ref.shape
    n = H * Wq

    # ---- zero halo: two rows + the right zero-column block (cheap) ---------
    zrow = jnp.zeros((Wq, C2), hbuf_ref.dtype)
    hbuf_ref[0, :, :] = zrow
    hbuf_ref[H + 1, :, :] = zrow
    hbuf_ref[1:H + 1, W:Wq, :] = jnp.zeros((H, Wq - W, C2), hbuf_ref.dtype)

    # ---- 1x1 conv (bf16 MXU, f32 accumulate) + BN1 affine + ReLU -----------
    x = x_ref[0].reshape(H * W, C).astype(jnp.bfloat16)
    h1 = jnp.dot(x, w1_ref[...], preferred_element_type=jnp.float32)
    h1 = jnp.maximum(h1 * s1_ref[...] + b1_ref[...], 0.0)          # (H*W, 2C) f32

    # aligned payload write: rows 1..H, columns [0, W)
    hbuf_ref[1:H + 1, 0:W, :] = h1.reshape(H, W, C2)

    # ---- 3x3 conv (pad=1) as a single fused matmul, K = 9*2C ---------------
    hb = hbuf_ref[...]                                              # (H+2, Wq, 2C)
    # dy taps: cheap leading-dim slices, concatenated along channels
    s = jnp.concatenate(
        [hb[dy:dy + H].reshape(n, C2) for dy in range(3)], axis=-1)  # (n, 3*2C)
    # dx taps: XLU rolls along the flattened (H*Wq) spatial axis.
    # shift +1 -> column x-1 (left tap; wraps into a zero column),
    # shift n-1 (== -1) -> column x+1 (right tap).
    im2col = jnp.concatenate(
        [pltpu.roll(s, 1, axis=0).astype(jnp.bfloat16),
         s.astype(jnp.bfloat16),
         pltpu.roll(s, n - 1, axis=0).astype(jnp.bfloat16)],
        axis=-1)                                                    # (n, 9*2C) bf16
    acc = jnp.dot(im2col, w2_ref[...],
                  preferred_element_type=jnp.float32)               # (n, C) f32

    # ---- BN2 affine + ReLU, drop pad columns, store -------------------------
    out = jnp.maximum(acc * s2_ref[...] + b2_ref[...], 0.0)
    out = out.reshape(H, Wq, C)[:, 0:W, :]
    o_ref[0] = out.astype(o_ref.dtype)


def conv_block_nhwc(x, w1, s1, b1, w2, s2, b2):
    """x: (B, H, W, C) f32 -> (B, H, W, C) f32.  No layout transposes."""
    B, H, W, C = x.shape
    C2 = w1.shape[1]
    Wq = _round_up(W + 2, 8)                     # aligned padded width

    # Weight prep (tiny, host/XLA side): bf16 for the MXU; 3x3 weight flattened
    # to (9*C2, C) in (dx, dy, in) order to match the im2col lane layout.
    w1_bf = w1.astype(jnp.bfloat16)
    w2_flat = jnp.transpose(w2, (1, 0, 2, 3)).reshape(9 * C2, C).astype(jnp.bfloat16)
    s1 = s1.reshape(1, C2).astype(jnp.float32)
    b1 = b1.reshape(1, C2).astype(jnp.float32)
    s2 = s2.reshape(1, C).astype(jnp.float32)
    b2 = b2.reshape(1, C).astype(jnp.float32)

    # Advisory cost estimate for XLA scheduling around the custom call.
    flops = 2 * B * H * W * (C * C2 + 9 * C2 * C)
    bytes_accessed = (2 * B * H * W * C) * 4 + w1_bf.size * 2 + w2_flat.size * 2 \
        + (2 * C2 + 2 * C) * 4
    cost = pl.CostEstimate(flops=int(flops), transcendentals=0,
                           bytes_accessed=int(bytes_accessed))

    # Explicit VMEM budget: double-buffered in/out blocks + scratch + weights.
    blk = H * W * C * 4
    scratch_bytes = (H + 2) * Wq * C2 * 4
    wbytes = w1_bf.size * 2 + w2_flat.size * 2
    vmem_limit = 2 * (blk + blk) + scratch_bytes + wbytes + (4 << 20)
    vmem_limit = int(min(96 << 20, max(16 << 20, vmem_limit)))

    out = pl.pallas_call(
        conv_block_kernel,
        out_shape=jax.ShapeDtypeStruct((B, H, W, C), x.dtype),
        grid_spec=pltpu.PrefetchScalarGridSpec(
            num_scalar_prefetch=0,
            grid=(B,),
            in_specs=[
                pl.BlockSpec((1, H, W, C), lambda b: (b, 0, 0, 0)),
                pl.BlockSpec((C, C2), lambda b: (0, 0)),
                pl.BlockSpec((1, C2), lambda b: (0, 0)),
                pl.BlockSpec((1, C2), lambda b: (0, 0)),
                pl.BlockSpec((9 * C2, C), lambda b: (0, 0)),
                pl.BlockSpec((1, C), lambda b: (0, 0)),
                pl.BlockSpec((1, C), lambda b: (0, 0)),
            ],
            out_specs=pl.BlockSpec((1, H, W, C), lambda b: (b, 0, 0, 0)),
            scratch_shapes=[pltpu.VMEM((H + 2, Wq, C2), jnp.float32)],
        ),
        compiler_params=pltpu.CompilerParams(
            dimension_semantics=("parallel",),
            vmem_limit_bytes=vmem_limit),
        cost_estimate=cost,
    )(x, w1_bf, s1, b1, w2_flat, s2, b2)
    return out


def conv_block(x_nchw, w1, s1, b1, w2, s2, b2):
    """NCHW convenience wrapper (PyTorch convention).  Prefer conv_block_nhwc
    end-to-end to avoid these boundary transposes."""
    x = jnp.transpose(x_nchw, (0, 2, 3, 1))
    out = conv_block_nhwc(x, w1, s1, b1, w2, s2, b2)
    return jnp.transpose(out, (0, 3, 1, 2))


def reference_nhwc(x_nhwc, w1, b1c, g1, be1, rm1, rv1,
                   w2, b2c, g2, be2, rm2, rv2, eps=1e-5):
    """Pure-JAX f32 reference (eval-mode BN), NHWC."""
    h = jnp.einsum("bhwc,cd->bhwd", x_nhwc, w1) + b1c
    h = (h - rm1) / jnp.sqrt(rv1 + eps) * g1 + be1
    h = jnp.maximum(h, 0.0)
    h = lax.conv_general_dilated(
        h, w2, window_strides=(1, 1), padding="SAME",
        dimension_numbers=("NHWC", "HWIO", "NHWC")) + b2c
    h = (h - rm2) / jnp.sqrt(rv2 + eps) * g2 + be2
    return jnp.maximum(h, 0.0)


if __name__ == "__main__":
    key = jax.random.PRNGKey(0)
    B, N, H, W = 2, 4, 16, 16
    C, C2 = N, 2 * N
    eps = 1e-5

    ks = jax.random.split(key, 12)
    x_nchw = jax.random.normal(ks[0], (B, C, H, W), jnp.float32)

    # Synthetic, deterministic parameters (shapes follow the module __init__).
    w1 = jax.random.normal(ks[1], (C, C2), jnp.float32) * 0.2        # 1x1 conv (in,out)
    b1c = jax.random.normal(ks[2], (C2,), jnp.float32) * 0.1
    g1 = 1.0 + 0.1 * jax.random.normal(ks[3], (C2,), jnp.float32)
    be1 = 0.1 * jax.random.normal(ks[4], (C2,), jnp.float32)
    rm1 = 0.1 * jax.random.normal(ks[5], (C2,), jnp.float32)
    rv1 = jax.random.uniform(ks[6], (C2,), jnp.float32, 0.5, 1.5)

    w2 = jax.random.normal(ks[7], (3, 3, C2, C), jnp.float32) * 0.1  # 3x3 conv HWIO
    b2c = jax.random.normal(ks[8], (C,), jnp.float32) * 0.1
    g2 = 1.0 + 0.1 * jax.random.normal(ks[9], (C,), jnp.float32)
    be2 = 0.1 * jax.random.normal(ks[10], (C,), jnp.float32)
    rm2 = 0.1 * jax.random.normal(ks[11], (C,), jnp.float32)
    rv2 = jax.random.uniform(jax.random.fold_in(key, 99), (C,), jnp.float32, 0.5, 1.5)

    # Fold BN (eval mode) + conv bias into per-channel scale / bias.
    scale1 = g1 / jnp.sqrt(rv1 + eps)
    bias1 = (b1c - rm1) * scale1 + be1
    scale2 = g2 / jnp.sqrt(rv2 + eps)
    bias2 = (b2c - rm2) * scale2 + be2

    out = conv_block(x_nchw, w1, scale1, bias1, w2, scale2, bias2)
    out = jax.block_until_ready(out)

    ref_nhwc = reference_nhwc(jnp.transpose(x_nchw, (0, 2, 3, 1)),
                              w1, b1c, g1, be1, rm1, rv1,
                              w2, b2c, g2, be2, rm2, rv2, eps)
    ref = jnp.transpose(ref_nhwc, (0, 3, 1, 2))

    assert out.shape == (B, C, H, W)
    # bf16 MXU inputs (f32 accumulation) -> loosened tolerance vs. pure-f32 ref.
    assert jnp.allclose(out, ref, rtol=2e-2, atol=2e-2), (
        f"max abs err = {jnp.max(jnp.abs(out - ref))}")
    print("KERNEL_OK")
</pallas_src>

<mosaic_0001>
module attributes {stable_mosaic.version = 11 : i64} {
  func.func @conv_block_kernel(%arg0: i32, %arg1: memref<1x16x16x4xf32, #tpu.memory_space<vmem>>, %arg2: memref<4x8xbf16, #tpu.memory_space<vmem>>, %arg3: memref<1x8xf32, #tpu.memory_space<vmem>>, %arg4: memref<1x8xf32, #tpu.memory_space<vmem>>, %arg5: memref<72x4xbf16, #tpu.memory_space<vmem>>, %arg6: memref<1x4xf32, #tpu.memory_space<vmem>>, %arg7: memref<1x4xf32, #tpu.memory_space<vmem>>, %arg8: memref<1x16x16x4xf32, #tpu.memory_space<vmem>>, %arg9: memref<18x24x8xf32, #tpu.memory_space<vmem>>) attributes {dimension_semantics = [#tpu.dimension_semantics<parallel>], iteration_bounds = array<i64: 2>, scalar_prefetch = 0 : i64, scratch_operands = 1 : i64, tpu.core_type = #tpu.core_type<tc>, window_params = [{transform_indices = @transform_0, window_bounds = array<i64: 1, 16, 16, 4>}, {pipeline_mode = #tpu.pipeline_mode<synchronous>, transform_indices = @transform_1, window_bounds = array<i64: 4, 8>}, {pipeline_mode = #tpu.pipeline_mode<synchronous>, transform_indices = @transform_2, window_bounds = array<i64: 1, 8>}, {pipeline_mode = #tpu.pipeline_mode<synchronous>, transform_indices = @transform_3, window_bounds = array<i64: 1, 8>}, {pipeline_mode = #tpu.pipeline_mode<synchronous>, transform_indices = @transform_4, window_bounds = array<i64: 72, 4>}, {pipeline_mode = #tpu.pipeline_mode<synchronous>, transform_indices = @transform_5, window_bounds = array<i64: 1, 4>}, {pipeline_mode = #tpu.pipeline_mode<synchronous>, transform_indices = @transform_6, window_bounds = array<i64: 1, 4>}, {transform_indices = @transform_7, window_bounds = array<i64: 1, 16, 16, 4>}]} {
    %cst = arith.constant 0.000000e+00 : f32
    %0 = vector.broadcast %cst : f32 to vector<24x8xf32>
    %c0 = arith.constant 0 : index
    %c0_0 = arith.constant 0 : index
    %c0_1 = arith.constant 0 : index
    %1 = vector.load %arg9[%c0, %c0_0, %c0_1] : memref<18x24x8xf32, #tpu.memory_space<vmem>>, vector<1x24x8xf32>
    %2 = vector.shape_cast %1 : vector<1x24x8xf32> to vector<24x8xf32>
    %3 = vector.shape_cast %0 : vector<24x8xf32> to vector<1x24x8xf32>
    tpu.vector_store %arg9[%c0, %c0_0, %c0_1], %3 {strides = array<i32>} : memref<18x24x8xf32, #tpu.memory_space<vmem>>, vector<1x24x8xf32>,
    %c17 = arith.constant 17 : index
    %c0_2 = arith.constant 0 : index
    %c0_3 = arith.constant 0 : index
    %4 = vector.load %arg9[%c17, %c0_2, %c0_3] : memref<18x24x8xf32, #tpu.memory_space<vmem>>, vector<1x24x8xf32>
    %5 = vector.shape_cast %4 : vector<1x24x8xf32> to vector<24x8xf32>
    %6 = vector.shape_cast %0 : vector<24x8xf32> to vector<1x24x8xf32>
    tpu.vector_store %arg9[%c17, %c0_2, %c0_3], %6 {strides = array<i32>} : memref<18x24x8xf32, #tpu.memory_space<vmem>>, vector<1x24x8xf32>,
    %cst_4 = arith.constant 0.000000e+00 : f32
    %7 = vector.broadcast %cst_4 : f32 to vector<16x8x8xf32>
    %c1 = arith.constant 1 : index
    %c16 = arith.constant 16 : index
    %c0_5 = arith.constant 0 : index
    %8 = vector.load %arg9[%c1, %c16, %c0_5] : memref<18x24x8xf32, #tpu.memory_space<vmem>>, vector<16x8x8xf32>
    tpu.vector_store %arg9[%c1, %c16, %c0_5], %7 {strides = array<i32>} : memref<18x24x8xf32, #tpu.memory_space<vmem>>, vector<16x8x8xf32>,
    %c0_6 = arith.constant 0 : index
    %c0_7 = arith.constant 0 : index
    %c0_8 = arith.constant 0 : index
    %c0_9 = arith.constant 0 : index
    %9 = vector.load %arg1[%c0_6, %c0_7, %c0_8, %c0_9] : memref<1x16x16x4xf32, #tpu.memory_space<vmem>>, vector<1x16x16x4xf32>
    %10 = vector.shape_cast %9 : vector<1x16x16x4xf32> to vector<16x16x4xf32>
    %11 = vector.shape_cast %10 : vector<16x16x4xf32> to vector<256x4xf32>
    %12 = arith.truncf %11 : vector<256x4xf32> to vector<256x4xbf16>
    %c0_10 = arith.constant 0 : index
    %c0_11 = arith.constant 0 : index
    %13 = vector.load %arg2[%c0_10, %c0_11] : memref<4x8xbf16, #tpu.memory_space<vmem>>, vector<4x8xbf16>
    %cst_12 = arith.constant dense<0.000000e+00> : vector<256x8xf32>
    %14 = tpu.matmul %12, %13, %cst_12 {dimension_numbers = #tpu.dot_dimension_numbers<[1], [0], [0], [1], [0, 0, 1, 1], [], []>} : vector<256x4xbf16>, vector<4x8xbf16>, vector<256x8xf32> -> vector<256x8xf32>
    %c0_13 = arith.constant 0 : index
    %c0_14 = arith.constant 0 : index
    %15 = vector.load %arg3[%c0_13, %c0_14] : memref<1x8xf32, #tpu.memory_space<vmem>>, vector<1x8xf32>
    %16 = vector.broadcast %15 : vector<1x8xf32> to vector<256x8xf32>
    %17 = arith.mulf %14, %16 : vector<256x8xf32>
    %c0_15 = arith.constant 0 : index
    %c0_16 = arith.constant 0 : index
    %18 = vector.load %arg4[%c0_15, %c0_16] : memref<1x8xf32, #tpu.memory_space<vmem>>, vector<1x8xf32>
    %19 = vector.broadcast %18 : vector<1x8xf32> to vector<256x8xf32>
    %20 = arith.addf %17, %19 : vector<256x8xf32>
    %cst_17 = arith.constant 0.000000e+00 : f32
    %21 = vector.broadcast %cst_17 : f32 to vector<256x8xf32>
    %22 = arith.maximumf %20, %21 : vector<256x8xf32>
    %23 = vector.shape_cast %22 : vector<256x8xf32> to vector<16x16x8xf32>
    %c1_18 = arith.constant 1 : index
    %c0_19 = arith.constant 0 : index
    %c0_20 = arith.constant 0 : index
    %24 = vector.load %arg9[%c1_18, %c0_19, %c0_20] : memref<18x24x8xf32, #tpu.memory_space<vmem>>, vector<16x16x8xf32>
    tpu.vector_store %arg9[%c1_18, %c0_19, %c0_20], %23 {strides = array<i32>} : memref<18x24x8xf32, #tpu.memory_space<vmem>>, vector<16x16x8xf32>,
    %c0_21 = arith.constant 0 : index
    %c0_22 = arith.constant 0 : index
    %c0_23 = arith.constant 0 : index
    %25 = vector.load %arg9[%c0_21, %c0_22, %c0_23] : memref<18x24x8xf32, #tpu.memory_space<vmem>>, vector<18x24x8xf32>
    %26 = vector.extract_strided_slice %25 {offsets = [0, 0, 0], sizes = [16, 24, 8], strides = [1, 1, 1]} : vector<18x24x8xf32> to vector<16x24x8xf32>
    %27 = vector.shape_cast %26 : vector<16x24x8xf32> to vector<384x8xf32>
    %28 = vector.extract_strided_slice %25 {offsets = [1, 0, 0], sizes = [16, 24, 8], strides = [1, 1, 1]} : vector<18x24x8xf32> to vector<16x24x8xf32>
    %29 = vector.shape_cast %28 : vector<16x24x8xf32> to vector<384x8xf32>
    %30 = vector.extract_strided_slice %25 {offsets = [2, 0, 0], sizes = [16, 24, 8], strides = [1, 1, 1]} : vector<18x24x8xf32> to vector<16x24x8xf32>
    %31 = vector.shape_cast %30 : vector<16x24x8xf32> to vector<384x8xf32>
    %32 = tpu.concatenate %27, %29, %31 in 1 : vector<384x8xf32>, vector<384x8xf32>, vector<384x8xf32> -> vector<384x24xf32>
    %c1_i32 = arith.constant 1 : i32
    %33 = tpu.dynamic_rotate %32 by %c1_i32 dim 0 : vector<384x24xf32>, i32 -> vector<384x24xf32>
    %34 = arith.truncf %33 : vector<384x24xf32> to vector<384x24xbf16>
    %35 = arith.truncf %32 : vector<384x24xf32> to vector<384x24xbf16>
    %c383_i32 = arith.constant 383 : i32
    %36 = tpu.dynamic_rotate %32 by %c383_i32 dim 0 : vector<384x24xf32>, i32 -> vector<384x24xf32>
    %37 = arith.truncf %36 : vector<384x24xf32> to vector<384x24xbf16>
    %38 = tpu.concatenate %34, %35, %37 in 1 : vector<384x24xbf16>, vector<384x24xbf16>, vector<384x24xbf16> -> vector<384x72xbf16>
    %c0_24 = arith.constant 0 : index
    %c0_25 = arith.constant 0 : index
    %39 = vector.load %arg5[%c0_24, %c0_25] : memref<72x4xbf16, #tpu.memory_space<vmem>>, vector<72x4xbf16>
    %cst_26 = arith.constant dense<0.000000e+00> : vector<384x4xf32>
    %40 = tpu.matmul %38, %39, %cst_26 {dimension_numbers = #tpu.dot_dimension_numbers<[1], [0], [0], [1], [0, 0, 1, 1], [], []>} : vector<384x72xbf16>, vector<72x4xbf16>, vector<384x4xf32> -> vector<384x4xf32>
    %c0_27 = arith.constant 0 : index
    %c0_28 = arith.constant 0 : index
    %41 = vector.load %arg6[%c0_27, %c0_28] : memref<1x4xf32, #tpu.memory_space<vmem>>, vector<1x4xf32>
    %42 = vector.broadcast %41 : vector<1x4xf32> to vector<384x4xf32>
    %43 = arith.mulf %40, %42 : vector<384x4xf32>
    %c0_29 = arith.constant 0 : index
    %c0_30 = arith.constant 0 : index
    %44 = vector.load %arg7[%c0_29, %c0_30] : memref<1x4xf32, #tpu.memory_space<vmem>>, vector<1x4xf32>
    %45 = vector.broadcast %44 : vector<1x4xf32> to vector<384x4xf32>
    %46 = arith.addf %43, %45 : vector<384x4xf32>
    %cst_31 = arith.constant 0.000000e+00 : f32
    %47 = vector.broadcast %cst_31 : f32 to vector<384x4xf32>
    %48 = arith.maximumf %46, %47 : vector<384x4xf32>
    %49 = vector.shape_cast %48 : vector<384x4xf32> to vector<16x24x4xf32>
    %50 = vector.extract_strided_slice %49 {offsets = [0, 0, 0], sizes = [16, 16, 4], strides = [1, 1, 1]} : vector<16x24x4xf32> to vector<16x16x4xf32>
    %c0_32 = arith.constant 0 : index
    %c0_33 = arith.constant 0 : index
    %c0_34 = arith.constant 0 : index
    %c0_35 = arith.constant 0 : index
    %51 = vector.load %arg8[%c0_32, %c0_33, %c0_34, %c0_35] : memref<1x16x16x4xf32, #tpu.memory_space<vmem>>, vector<1x16x16x4xf32>
    %52 = vector.shape_cast %51 : vector<1x16x16x4xf32> to vector<16x16x4xf32>
    %53 = vector.shape_cast %50 : vector<16x16x4xf32> to vector<1x16x16x4xf32>
    tpu.vector_store %arg8[%c0_32, %c0_33, %c0_34, %c0_35], %53 {strides = array<i32>} : memref<1x16x16x4xf32, #tpu.memory_space<vmem>>, vector<1x16x16x4xf32>,
    return
  }
  func.func @transform_0(%arg0: i32) -> (i32, i32, i32, i32) {
    %c0_i32 = arith.constant 0 : i32
    %c0_i32_0 = arith.constant 0 : i32
    %c0_i32_1 = arith.constant 0 : i32
    %c0_i32_2 = arith.constant 0 : i32
    return %arg0, %c0_i32, %c0_i32_0, %c0_i32_1 : i32, i32, i32, i32
  }
  func.func @transform_1(%arg0: i32) -> (i32, i32) {
    %c0_i32 = arith.constant 0 : i32
    %c0_i32_0 = arith.constant 0 : i32
    %c0_i32_1 = arith.constant 0 : i32
    return %c0_i32, %c0_i32_0 : i32, i32
  }
  func.func @transform_2(%arg0: i32) -> (i32, i32) {
    %c0_i32 = arith.constant 0 : i32
    %c0_i32_0 = arith.constant 0 : i32
    %c0_i32_1 = arith.constant 0 : i32
    return %c0_i32, %c0_i32_0 : i32, i32
  }
  func.func @transform_3(%arg0: i32) -> (i32, i32) {
    %c0_i32 = arith.constant 0 : i32
    %c0_i32_0 = arith.constant 0 : i32
    %c0_i32_1 = arith.constant 0 : i32
    return %c0_i32, %c0_i32_0 : i32, i32
  }
  func.func @transform_4(%arg0: i32) -> (i32, i32) {
    %c0_i32 = arith.constant 0 : i32
    %c0_i32_0 = arith.constant 0 : i32
    %c0_i32_1 = arith.constant 0 : i32
    return %c0_i32, %c0_i32_0 : i32, i32
  }
  func.func @transform_5(%arg0: i32) -> (i32, i32) {
    %c0_i32 = arith.constant 0 : i32
    %c0_i32_0 = arith.constant 0 : i32
    %c0_i32_1 = arith.constant 0 : i32
    return %c0_i32, %c0_i32_0 : i32, i32
  }
  func.func @transform_6(%arg0: i32) -> (i32, i32) {
    %c0_i32 = arith.constant 0 : i32
    %c0_i32_0 = arith.constant 0 : i32
    %c0_i32_1 = arith.constant 0 : i32
    return %c0_i32, %c0_i32_0 : i32, i32
  }
  func.func @transform_7(%arg0: i32) -> (i32, i32, i32, i32) {
    %c0_i32 = arith.constant 0 : i32
    %c0_i32_0 = arith.constant 0 : i32
    %c0_i32_1 = arith.constant 0 : i32
    %c0_i32_2 = arith.constant 0 : i32
    return %arg0, %c0_i32, %c0_i32_0, %c0_i32_1 : i32, i32, i32, i32
  }
}

</mosaic_0001>

<llo_original>
// kernel: tpu_custom_call.1
$region0: #{tpu_custom_call.1}
  #allocation0 [shape = 'u32[]', space=smem, size = 0x4, offset = 0x4, fixed_abs, tag = 'smem constant byte address 0x4 - core index']
  #allocation1 [shape = 'u32[144,128]{1,0:T(1,128)}', space=vmem, size = 0x12000, scoped, tag = 'internal scratch']
  #allocation2 [shape = 'f32[18,24,8]{2,1,0:T(8,128)}', space=vmem, size = 0x36000, scoped, tag = 'scratch operand']
  %s0 = inlined_call_operand.vmem [shape: f32[2,16,16,4], index: 0, kind: input, shape index: {}]
  %s1 = inlined_call_operand.vmem [shape: bf16[4,8], index: 1, kind: input, shape index: {}]
  %s2 = inlined_call_operand.vmem [shape: f32[1,8], index: 2, kind: input, shape index: {}]
  %s3 = inlined_call_operand.vmem [shape: f32[1,8], index: 3, kind: input, shape index: {}]
  %s4 = inlined_call_operand.vmem [shape: bf16[72,4], index: 4, kind: input, shape index: {}]
  %s5 = inlined_call_operand.vmem [shape: f32[1,4], index: 5, kind: input, shape index: {}]
  %s6 = inlined_call_operand.vmem [shape: f32[1,4], index: 6, kind: input, shape index: {}]
  %s7 = inlined_call_operand.vmem [shape: f32[2,16,16,4], index: 7, kind: output, shape index: {}]
  %s8 = sld [smem:[#allocation0]]
  $region61: #{tpu_custom_call.1} parent=0
    _
  %s10 = ssub.s32 1, %s8
  %s11 = scalar_select 0, %s10, %s8
  loop: start=0, step=1, limit=4
  $region2: #{tpu_custom_call.1} parent=0 // loop_pre_header
    _
  $region3: #{tpu_custom_call.1} parent=0 // loop_header
    %s13 = sphi 0, %s17
    %p14 = scmp.ge.s32.totalorder %s13, 4
    %s23 = sphi 0, %s25
    %s26 = sphi 0, %s23
    %s27 = sphi 0, %s26
    %s43 = sphi 0, %s27
    %s47 = sphi 0, %s47
    %s49 = sphi 0, %s47
    %s50 = sphi 0, %s49
    %s64 = sphi 0, %s50
    %s68 = sphi 0, %s68
    %s70 = sphi 0, %s68
    %s71 = sphi 0, %s70
    %s85 = sphi 0, %s71
    %s89 = sphi 0, %s89
    %s91 = sphi 0, %s89
    %s92 = sphi 0, %s91
    %s106 = sphi 0, %s92
    %s110 = sphi 0, %s110
    %s112 = sphi 0, %s110
    %s113 = sphi 0, %s112
    %s127 = sphi 0, %s113
    %s131 = sphi 0, %s131
    %s133 = sphi 0, %s131
    %s134 = sphi 0, %s133
    %s148 = sphi 0, %s134
    %s152 = sphi 0, %s152
    %s154 = sphi 0, %s152
    %s155 = sphi 0, %s154
    %s169 = sphi 0, %s155
    %s175 = sphi 0, %s177
    %s178 = sphi 0, %s175
    %s179 = sphi 0, %s178
    %s195 = sphi 0, %s179
  $region4: #{tpu_custom_call.1} parent=0 // loop_header_branch
    %16 = sbr.rel (%p14) target = $region8
  $region5: #{tpu_custom_call.1} parent=0 // loop_body
    %s18 = ssub.s32 %s13, 1
    %s19 = ssub.s32 %s13, 2
    %s20 = sadd.s32 %s13, 1
    %s21 = ssub.s32 %s13, %s20
    %p22 = scmp.eq.s32.totalorder %s21, 0
    %s24 = sadd.s32 %s23, 1
    %s25 = scalar_select %p22, %s23, %s24
    %p28 = pneg %p22
    %p29 = scmp.eq.s32.totalorder %s13, 1
    %p30 = por %p28, %p29
    %p31 = scmp.ne.s32.totalorder %s23, %s26
    %p32 = scmp.eq.s32.totalorder %s13, 0
    %p33 = por %p31, %p32
    %p34 = scmp.ne.s32.totalorder %s23, %s26
    %p35 = scmp.eq.s32.totalorder %s18, 1
    %p36 = por %p34, %p35
    %p37 = scmp.ne.s32.totalorder %s26, %s27
    %p38 = scmp.eq.s32.totalorder %s18, 0
    %p39 = por %p37, %p38
    %p40 = scmp.ne.s32.totalorder %s26, %s27
    %p41 = scmp.eq.s32.totalorder %s19, 1
    %p42 = por %p40, %p41
    %p44 = scmp.ne.s32.totalorder %s27, %s43
    %p45 = scmp.eq.s32.totalorder %s19, 0
    %p46 = por %p44, %p45
    %s48 = sadd.s32 %s47, 1
    %p51 = scmp.eq.s32.totalorder %s13, 1
    %p52 = scmp.ne.s32.totalorder %s47, %s49
    %p53 = scmp.eq.s32.totalorder %s13, 0
    %p54 = por %p52, %p53
    %p55 = scmp.ne.s32.totalorder %s47, %s49
    %p56 = scmp.eq.s32.totalorder %s18, 1
    %p57 = por %p55, %p56
    %p58 = scmp.ne.s32.totalorder %s49, %s50
    %p59 = scmp.eq.s32.totalorder %s18, 0
    %p60 = por %p58, %p59
    %p61 = scmp.ne.s32.totalorder %s49, %s50
    %p62 = scmp.eq.s32.totalorder %s19, 1
    %p63 = por %p61, %p62
    %p65 = scmp.ne.s32.totalorder %s50, %s64
    %p66 = scmp.eq.s32.totalorder %s19, 0
    %p67 = por %p65, %p66
    %s69 = sadd.s32 %s68, 1
    %p72 = scmp.eq.s32.totalorder %s13, 1
    %p73 = scmp.ne.s32.totalorder %s68, %s70
    %p74 = scmp.eq.s32.totalorder %s13, 0
    %p75 = por %p73, %p74
    %p76 = scmp.ne.s32.totalorder %s68, %s70
    %p77 = scmp.eq.s32.totalorder %s18, 1
    %p78 = por %p76, %p77
    %p79 = scmp.ne.s32.totalorder %s70, %s71
    %p80 = scmp.eq.s32.totalorder %s18, 0
    %p81 = por %p79, %p80
    %p82 = scmp.ne.s32.totalorder %s70, %s71
    %p83 = scmp.eq.s32.totalorder %s19, 1
    %p84 = por %p82, %p83
    %p86 = scmp.ne.s32.totalorder %s71, %s85
    %p87 = scmp.eq.s32.totalorder %s19, 0
    %p88 = por %p86, %p87
    %s90 = sadd.s32 %s89, 1
    %p93 = scmp.eq.s32.totalorder %s13, 1
    %p94 = scmp.ne.s32.totalorder %s89, %s91
    %p95 = scmp.eq.s32.totalorder %s13, 0
    %p96 = por %p94, %p95
    %p97 = scmp.ne.s32.totalorder %s89, %s91
    %p98 = scmp.eq.s32.totalorder %s18, 1
    %p99 = por %p97, %p98
    %p100 = scmp.ne.s32.totalorder %s91, %s92
    %p101 = scmp.eq.s32.totalorder %s18, 0
    %p102 = por %p100, %p101
    %p103 = scmp.ne.s32.totalorder %s91, %s92
    %p104 = scmp.eq.s32.totalorder %s19, 1
    %p105 = por %p103, %p104
    %p107 = scmp.ne.s32.totalorder %s92, %s106
    %p108 = scmp.eq.s32.totalorder %s19, 0
    %p109 = por %p107, %p108
    %s111 = sadd.s32 %s110, 1
    %p114 = scmp.eq.s32.totalorder %s13, 1
    %p115 = scmp.ne.s32.totalorder %s110, %s112
    %p116 = scmp.eq.s32.totalorder %s13, 0
    %p117 = por %p115, %p116
    %p118 = scmp.ne.s32.totalorder %s110, %s112
    %p119 = scmp.eq.s32.totalorder %s18, 1
    %p120 = por %p118, %p119
    %p121 = scmp.ne.s32.totalorder %s112, %s113
    %p122 = scmp.eq.s32.totalorder %s18, 0
    %p123 = por %p121, %p122
    %p124 = scmp.ne.s32.totalorder %s112, %s113
    %p125 = scmp.eq.s32.totalorder %s19, 1
    %p126 = por %p124, %p125
    %p128 = scmp.ne.s32.totalorder %s113, %s127
    %p129 = scmp.eq.s32.totalorder %s19, 0
    %p130 = por %p128, %p129
    %s132 = sadd.s32 %s131, 1
    %p135 = scmp.eq.s32.totalorder %s13, 1
    %p136 = scmp.ne.s32.totalorder %s131, %s133
    %p137 = scmp.eq.s32.totalorder %s13, 0
    %p138 = por %p136, %p137
    %p139 = scmp.ne.s32.totalorder %s131, %s133
    %p140 = scmp.eq.s32.totalorder %s18, 1
    %p141 = por %p139, %p140
    %p142 = scmp.ne.s32.totalorder %s133, %s134
    %p143 = scmp.eq.s32.totalorder %s18, 0
    %p144 = por %p142, %p143
    %p145 = scmp.ne.s32.totalorder %s133, %s134
    %p146 = scmp.eq.s32.totalorder %s19, 1
    %p147 = por %p145, %p146
    %p149 = scmp.ne.s32.totalorder %s134, %s148
    %p150 = scmp.eq.s32.totalorder %s19, 0
    %p151 = por %p149, %p150
    %s153 = sadd.s32 %s152, 1
    %p156 = scmp.eq.s32.totalorder %s13, 1
    %p157 = scmp.ne.s32.totalorder %s152, %s154
    %p158 = scmp.eq.s32.totalorder %s13, 0
    %p159 = por %p157, %p158
    %p160 = scmp.ne.s32.totalorder %s152, %s154
    %p161 = scmp.eq.s32.totalorder %s18, 1
    %p162 = por %p160, %p161
    %p163 = scmp.ne.s32.totalorder %s154, %s155
    %p164 = scmp.eq.s32.totalorder %s18, 0
    %p165 = por %p163, %p164
    %p166 = scmp.ne.s32.totalorder %s154, %s155
    %p167 = scmp.eq.s32.totalorder %s19, 1
    %p168 = por %p166, %p167
    %p170 = scmp.ne.s32.totalorder %s155, %s169
    %p171 = scmp.eq.s32.totalorder %s19, 0
    %p172 = por %p170, %p171
    %s173 = ssub.s32 %s13, %s20
    %p174 = scmp.eq.s32.totalorder %s173, 0
    %s176 = sadd.s32 %s175, 1
    %s177 = scalar_select %p174, %s175, %s176
    %p180 = pneg %p174
    %p181 = scmp.eq.s32.totalorder %s13, 1
    %p182 = por %p180, %p181
    %p183 = scmp.ne.s32.totalorder %s175, %s178
    %p184 = scmp.eq.s32.totalorder %s13, 0
    %p185 = por %p183, %p184
    %p186 = scmp.ne.s32.totalorder %s175, %s178
    %p187 = scmp.eq.s32.totalorder %s18, 1
    %p188 = por %p186, %p187
    %p189 = scmp.ne.s32.totalorder %s178, %s179
    %p190 = scmp.eq.s32.totalorder %s18, 0
    %p191 = por %p189, %p190
    %p192 = scmp.ne.s32.totalorder %s178, %s179
    %p193 = scmp.eq.s32.totalorder %s19, 1
    %p194 = por %p192, %p193
    %p196 = scmp.ne.s32.totalorder %s179, %s195
    %p197 = scmp.eq.s32.totalorder %s19, 0
    %p198 = por %p196, %p197
    %p199 = scmp.le.s32.totalorder 1, %s13
    %p200 = scmp.lt.s32.totalorder %s13, 3
    %p201 = pnand %p199, %p200
    %p202 = pneg %p201
    // Predicated region
    $region9: #{tpu_custom_call.1} parent=5 // pred_check
      _
    $region10: #{tpu_custom_call.1} parent=5 // pred_check_branch
      %204 = sbr.rel (%p201) target = $region12
    $region11: #{tpu_custom_call.1} parent=5 // pred_region
      %s205 = ssub.s32 %s13, 1
      // Predicated region
      $region13: #{tpu_custom_call.1} parent=11 // pred_check
        %p206 = pneg %p60
      $region14: #{tpu_custom_call.1} parent=11 // pred_check_branch
        %208 = sbr.rel (%p206) target = $region16
      $region15: #{tpu_custom_call.1} parent=11 // pred_region
        _
      $region16: #{tpu_custom_call.1} parent=11 // pred_fallthru
        _
      // Predicated region
      $region17: #{tpu_custom_call.1} parent=11 // pred_check
        %p209 = pneg %p81
      $region18: #{tpu_custom_call.1} parent=11 // pred_check_branch
        %211 = sbr.rel (%p209) target = $region20
      $region19: #{tpu_custom_call.1} parent=11 // pred_region
        _
      $region20: #{tpu_custom_call.1} parent=11 // pred_fallthru
        _
      // Predicated region
      $region21: #{tpu_custom_call.1} parent=11 // pred_check
        %p212 = pneg %p102
      $region22: #{tpu_custom_call.1} parent=11 // pred_check_branch
        %214 = sbr.rel (%p212) target = $region24
      $region23: #{tpu_custom_call.1} parent=11 // pred_region
        _
      $region24: #{tpu_custom_call.1} parent=11 // pred_fallthru
        _
      // Predicated region
      $region25: #{tpu_custom_call.1} parent=11 // pred_check
        %p215 = pneg %p123
      $region26: #{tpu_custom_call.1} parent=11 // pred_check_branch
        %217 = sbr.rel (%p215) target = $region28
      $region27: #{tpu_custom_call.1} parent=11 // pred_region
        _
      $region28: #{tpu_custom_call.1} parent=11 // pred_fallthru
        _
      // Predicated region
      $region29: #{tpu_custom_call.1} parent=11 // pred_check
        %p218 = pneg %p144
      $region30: #{tpu_custom_call.1} parent=11 // pred_check_branch
        %220 = sbr.rel (%p218) target = $region32
      $region31: #{tpu_custom_call.1} parent=11 // pred_region
        _
      $region32: #{tpu_custom_call.1} parent=11 // pred_fallthru
        _
      // Predicated region
      $region33: #{tpu_custom_call.1} parent=11 // pred_check
        %p221 = pneg %p165
      $region34: #{tpu_custom_call.1} parent=11 // pred_check_branch
        %223 = sbr.rel (%p221) target = $region36
      $region35: #{tpu_custom_call.1} parent=11 // pred_region
        _
      $region36: #{tpu_custom_call.1} parent=11 // pred_fallthru
        _
    $region12: #{tpu_custom_call.1} parent=5 // pred_fallthru
      _
    %p224 = scmp.lt.s32.totalorder %s13, 2
    // Predicated region
    $region37: #{tpu_custom_call.1} parent=5 // pred_check
      %p225 = pneg %p224
    $region38: #{tpu_custom_call.1} parent=5 // pred_check_branch
      %227 = sbr.rel (%p225) target = $region40
    $region39: #{tpu_custom_call.1} parent=5 // pred_region
      // Predicated region
      $region41: #{tpu_custom_call.1} parent=39 // pred_check
        %p228 = pneg %p33
      $region42: #{tpu_custom_call.1} parent=39 // pred_check_branch
        %230 = sbr.rel (%p228) target = $region44
      $region43: #{tpu_custom_call.1} parent=39 // pred_region
        %p231 = scmp.lt.s32.totalorder %s13, 1
        %s232 = scalar_select %p231, %s13, 1
        %s233 = smul.addr %s232, 32
        %s234 = smul.addr %s233, 8
        %s235 = scalar_lea.vmem %s0, %s234
      $region44: #{tpu_custom_call.1} parent=39 // pred_fallthru
        _
    $region40: #{tpu_custom_call.1} parent=5 // pred_fallthru
      _
    %p236 = scmp.le.s32.totalorder 1, %s13
    %p237 = scmp.lt.s32.totalorder %s13, 3
    %p238 = pnand %p236, %p237
    %p239 = pneg %p238
    // Predicated region
    $region45: #{tpu_custom_call.1} parent=5 // pred_check
      _
    $region46: #{tpu_custom_call.1} parent=5 // pred_check_branch
      %241 = sbr.rel (%p238) target = $region48
    $region47: #{tpu_custom_call.1} parent=5 // pred_region
      %s242 = ssub.s32 %s13, 1
      %p243 = scmp.lt.s32.totalorder %s18, 1
      %s244 = scalar_select %p243, %s18, 1
      %s245 = smul.addr %s244, 32
      %s246 = smul.addr %s245, 8
      %s247 = scalar_lea.vmem %s0, %s246
      %p248 = pneg %p39
      %p249 = pneg %p36
      %p250 = pneg %p60
      %p251 = pneg %p57
      %p252 = pneg %p81
      %p253 = pneg %p78
      %p254 = pneg %p102
      %p255 = pneg %p99
      %p256 = pneg %p123
      %p257 = pneg %p120
      %p258 = pneg %p144
      %p259 = pneg %p141
      %p260 = pneg %p165
      %p261 = pneg %p162
      %p262 = pneg %p191
      %p263 = pneg %p188
      %p264 = scmp.lt.s32.totalorder %s18, 1
      %s265 = scalar_select %p264, %s18, 1
      %s266 = smul.addr %s265, 32
      %s267 = smul.addr %s266, 8
      %s268 = scalar_lea.vmem %s7, %s267
      %p269 = scmp.lt.s32.totalorder %s18, 1
      %s270 = scalar_select %p269, %s18, 1
      %s271 = smul.addr %s270, 32
      %s272 = smul.addr %s271, 8
      %s273 = scalar_lea.vmem %s0, %s272
      %p274 = scmp.lt.s32.totalorder %s18, 1
      %s275 = scalar_select %p274, %s18, 1
      %s276 = smul.addr %s275, 32
      %s277 = smul.addr %s276, 8
      %s278 = scalar_lea.vmem %s7, %s277
      %vm280 = vcmask 64512
      %281 = vst.msk [vmem:[#allocation2] sm:$0xff] %vm280, 0.0
      %282 = vst.msk [vmem:[#allocation2 + $0x8] sm:$0xff] %vm280, 0.0
      %283 = vst.msk [vmem:[#allocation2 + $0x10] sm:$0xff] %vm280, 0.0
      %s284 = scalar_lea.vmem [#allocation2], 408
      %285 = vst.msk [vmem:[%s284] sm:$0xff] %vm280, 0.0
      %286 = vst.msk [vmem:[%s284 + $0x8] sm:$0xff] %vm280, 0.0
      %287 = vst.msk [vmem:[%s284 + $0x10] sm:$0xff] %vm280, 0.0
      %s288 = scalar_lea.vmem [#allocation2], 24
      %289 = vst.msk [vmem:[%s288 + $0x10] sm:$0xff] %vm280, 0.0
      %290 = vst.msk [vmem:[%s288 + $0x28] sm:$0xff] %vm280, 0.0
      %291 = vst.msk [vmem:[%s288 + $0x40] sm:$0xff] %vm280, 0.0
      %292 = vst.msk [vmem:[%s288 + $0x58] sm:$0xff] %vm280, 0.0
      %293 = vst.msk [vmem:[%s288 + $0x70] sm:$0xff] %vm280, 0.0
      %294 = vst.msk [vmem:[%s288 + $0x88] sm:$0xff] %vm280, 0.0
      %295 = vst.msk [vmem:[%s288 + $0xa0] sm:$0xff] %vm280, 0.0
      %296 = vst.msk [vmem:[%s288 + $0xb8] sm:$0xff] %vm280, 0.0
      %297 = vst.msk [vmem:[%s288 + $0xd0] sm:$0xff] %vm280, 0.0
      %298 = vst.msk [vmem:[%s288 + $0xe8] sm:$0xff] %vm280, 0.0
      %299 = vst.msk [vmem:[%s288 + $0x100] sm:$0xff] %vm280, 0.0
      %300 = vst.msk [vmem:[%s288 + $0x118] sm:$0xff] %vm280, 0.0
      %301 = vst.msk [vmem:[%s288 + $0x130] sm:$0xff] %vm280, 0.0
      %302 = vst.msk [vmem:[%s288 + $0x148] sm:$0xff] %vm280, 0.0
      %303 = vst.msk [vmem:[%s288 + $0x160] sm:$0xff] %vm280, 0.0
      %304 = vst.msk [vmem:[%s288 + $0x178] sm:$0xff] %vm280, 0.0
      %v305 = vld [vmem:[%s273] sm:$0xff]
      %v306 = vld [vmem:[%s273 + $0x8] sm:$0xff]
      %v307 = vld [vmem:[%s273 + $0x10] sm:$0xff]
      %v308 = vld [vmem:[%s273 + $0x18] sm:$0xff]
      %v309 = vld [vmem:[%s273 + $0x20] sm:$0xff]
      %v310 = vld [vmem:[%s273 + $0x28] sm:$0xff]
      %v311 = vld [vmem:[%s273 + $0x30] sm:$0xff]
      %v312 = vld [vmem:[%s273 + $0x38] sm:$0xff]
      %v313 = vld [vmem:[%s273 + $0x40] sm:$0xff]
      %v314 = vld [vmem:[%s273 + $0x48] sm:$0xff]
      %v315 = vld [vmem:[%s273 + $0x50] sm:$0xff]
      %v316 = vld [vmem:[%s273 + $0x58] sm:$0xff]
      %v317 = vld [vmem:[%s273 + $0x60] sm:$0xff]
      %v318 = vld [vmem:[%s273 + $0x68] sm:$0xff]
      %v319 = vld [vmem:[%s273 + $0x70] sm:$0xff]
      %v320 = vld [vmem:[%s273 + $0x78] sm:$0xff]
      %v321 = vld [vmem:[%s273 + $0x80] sm:$0xff]
      %v322 = vld [vmem:[%s273 + $0x88] sm:$0xff]
      %v323 = vld [vmem:[%s273 + $0x90] sm:$0xff]
      %v324 = vld [vmem:[%s273 + $0x98] sm:$0xff]
      %v325 = vld [vmem:[%s273 + $0xa0] sm:$0xff]
      %v326 = vld [vmem:[%s273 + $0xa8] sm:$0xff]
      %v327 = vld [vmem:[%s273 + $0xb0] sm:$0xff]
      %v328 = vld [vmem:[%s273 + $0xb8] sm:$0xff]
      %v329 = vld [vmem:[%s273 + $0xc0] sm:$0xff]
      %v330 = vld [vmem:[%s273 + $0xc8] sm:$0xff]
      %v331 = vld [vmem:[%s273 + $0xd0] sm:$0xff]
      %v332 = vld [vmem:[%s273 + $0xd8] sm:$0xff]
      %v333 = vld [vmem:[%s273 + $0xe0] sm:$0xff]
      %v334 = vld [vmem:[%s273 + $0xe8] sm:$0xff]
      %v335 = vld [vmem:[%s273 + $0xf0] sm:$0xff]
      %v336 = vld [vmem:[%s273 + $0xf8] sm:$0xff]
      %v337 = vpack.c.bf16 %v306, %v305
      %v338 = vpack.c.bf16 %v308, %v307
      %v339 = vpack.c.bf16 %v310, %v309
      %v340 = vpack.c.bf16 %v312, %v311
      %v341 = vpack.c.bf16 %v314, %v313
      %v342 = vpack.c.bf16 %v316, %v315
      %v343 = vpack.c.bf16 %v318, %v317
      %v344 = vpack.c.bf16 %v320, %v319
      %v345 = vpack.c.bf16 %v322, %v321
      %v346 = vpack.c.bf16 %v324, %v323
      %v347 = vpack.c.bf16 %v326, %v325
      %v348 = vpack.c.bf16 %v328, %v327
      %v349 = vpack.c.bf16 %v330, %v329
      %v350 = vpack.c.bf16 %v332, %v331
      %v351 = vpack.c.bf16 %v334, %v333
      %v352 = vpack.c.bf16 %v336, %v335
      %v353 = vld [vmem:[%s1] sm:$0x3]
      %vm354 = vcmask 31744
      %v356 = vsel %vm354, %v337, 0
      %v359 = vsel %vm354, %v338, 0
      %v362 = vsel %vm354, %v339, 0
      %v365 = vsel %vm354, %v340, 0
      %v368 = vsel %vm354, %v341, 0
      %v371 = vsel %vm354, %v342, 0
      %v374 = vsel %vm354, %v343, 0
      %v377 = vsel %vm354, %v344, 0
      %v380 = vsel %vm354, %v345, 0
      %v383 = vsel %vm354, %v346, 0
      %v386 = vsel %vm354, %v347, 0
      %v389 = vsel %vm354, %v348, 0
      %v392 = vsel %vm354, %v349, 0
      %v395 = vsel %vm354, %v350, 0
      %v398 = vsel %vm354, %v351, 0
      %v401 = vsel %vm354, %v352, 0
      %vm403 = vcmask 1041408
      %v405 = vsel %vm403, %v353, 0
      %407 = vmatprep.subr.bf16.mxu0 0
      %408 = vmatpush1.bf16.msra.mxu0 %v405
      %409 = vmatprep.subr.bf16.mxu0 0
      %410 = vmatpush1.bf16.msra.mxu0 0
      %411 = vmatprep.subr.bf16.mxu0 0
      %412 = vmatpush1.bf16.msra.mxu0 0
      %413 = vmatprep.subr.bf16.mxu0 0
      %414 = vmatpush1.bf16.msra.mxu0 0
      %415 = vmatprep.subr.bf16.mxu0 0
      %416 = vmatpush1.bf16.msra.mxu0 0
      %417 = vmatprep.subr.bf16.mxu0 0
      %418 = vmatpush1.bf16.msra.mxu0 0
      %419 = vmatprep.subr.bf16.mxu0 0
      %420 = vmatpush1.bf16.msra.mxu0 0
      %421 = vmatprep.subr.bf16.mxu0 0
      %422 = vmatpush1.bf16.msra.mxu0 0
      %423 = vmatprep.subr.bf16.mxu0 0
      %424 = vmatpush1.bf16.msra.mxu0 0
      %425 = vmatprep.subr.bf16.mxu0 0
      %426 = vmatpush1.bf16.msra.mxu0 0
      %427 = vmatprep.subr.bf16.mxu0 0
      %428 = vmatpush1.bf16.msra.mxu0 0
      %429 = vmatprep.subr.bf16.mxu0 0
      %430 = vmatpush1.bf16.msra.mxu0 0
      %431 = vmatprep.subr.bf16.mxu0 0
      %432 = vmatpush1.bf16.msra.mxu0 0
      %433 = vmatprep.subr.bf16.mxu0 0
      %434 = vmatpush1.bf16.msra.mxu0 0
      %435 = vmatprep.subr.bf16.mxu0 0
      %436 = vmatpush1.bf16.msra.mxu0 0
      %437 = vmatprep.subr.bf16.mxu0 0
      %438 = vmatpush1.bf16.msra.mxu0 0
      %439 = vmatprep.mubr.bf16.mxu0 0
      %440 = vmatmul.mubr.bf16.gmra.mrb[0].mxu0 %v356
      %v441 = vpop.f32.mrb[0].mxu0
      %v442 = vadd.f32 0.0, %v441
      %v443 = vpop.f32.mrb[0].mxu0
      %v444 = vpop.f32.mrb[0].mxu0
      %v445 = vadd.f32 0.0, %v444
      %v446 = vpop.f32.mrb[0].mxu0
      %447 = vmatprep.mubr.bf16.mxu0 0
      %448 = vmatmul.mubr.bf16.gmra.mrb[0].mxu0 %v359
      %v449 = vpop.f32.mrb[0].mxu0
      %v450 = vadd.f32 0.0, %v449
      %v451 = vpop.f32.mrb[0].mxu0
      %v452 = vpop.f32.mrb[0].mxu0
      %v453 = vadd.f32 0.0, %v452
      %v454 = vpop.f32.mrb[0].mxu0
      %455 = vmatprep.mubr.bf16.mxu0 0
      %456 = vmatmul.mubr.bf16.gmra.mrb[0].mxu0 %v362
      %v457 = vpop.f32.mrb[0].mxu0
      %v458 = vadd.f32 0.0, %v457
      %v459 = vpop.f32.mrb[0].mxu0
      %v460 = vpop.f32.mrb[0].mxu0
      %v461 = vadd.f32 0.0, %v460
      %v462 = vpop.f32.mrb[0].mxu0
      %463 = vmatprep.mubr.bf16.mxu0 0
      %464 = vmatmul.mubr.bf16.gmra.mrb[0].mxu0 %v365
      %v465 = vpop.f32.mrb[0].mxu0
      %v466 = vadd.f32 0.0, %v465
      %v467 = vpop.f32.mrb[0].mxu0
      %v468 = vpop.f32.mrb[0].mxu0
      %v469 = vadd.f32 0.0, %v468
      %v470 = vpop.f32.mrb[0].mxu0
      %471 = vmatprep.mubr.bf16.mxu0 0
      %472 = vmatmul.mubr.bf16.gmra.mrb[0].mxu0 %v368
      %v473 = vpop.f32.mrb[0].mxu0
      %v474 = vadd.f32 0.0, %v473
      %v475 = vpop.f32.mrb[0].mxu0
      %v476 = vpop.f32.mrb[0].mxu0
      %v477 = vadd.f32 0.0, %v476
      %v478 = vpop.f32.mrb[0].mxu0
      %479 = vmatprep.mubr.bf16.mxu0 0
      %480 = vmatmul.mubr.bf16.gmra.mrb[0].mxu0 %v371
      %v481 = vpop.f32.mrb[0].mxu0
      %v482 = vadd.f32 0.0, %v481
      %v483 = vpop.f32.mrb[0].mxu0
      %v484 = vpop.f32.mrb[0].mxu0
      %v485 = vadd.f32 0.0, %v484
      %v486 = vpop.f32.mrb[0].mxu0
      %487 = vmatprep.mubr.bf16.mxu0 0
      %488 = vmatmul.mubr.bf16.gmra.mrb[0].mxu0 %v374
      %v489 = vpop.f32.mrb[0].mxu0
      %v490 = vadd.f32 0.0, %v489
      %v491 = vpop.f32.mrb[0].mxu0
      %v492 = vpop.f32.mrb[0].mxu0
      %v493 = vadd.f32 0.0, %v492
      %v494 = vpop.f32.mrb[0].mxu0
      %495 = vmatprep.mubr.bf16.mxu0 0
      %496 = vmatmul.mubr.bf16.gmra.mrb[0].mxu0 %v377
      %v497 = vpop.f32.mrb[0].mxu0
      %v498 = vadd.f32 0.0, %v497
      %v499 = vpop.f32.mrb[0].mxu0
      %v500 = vpop.f32.mrb[0].mxu0
      %v501 = vadd.f32 0.0, %v500
      %v502 = vpop.f32.mrb[0].mxu0
      %503 = vmatprep.mubr.bf16.mxu0 0
      %504 = vmatmul.mubr.bf16.gmra.mrb[0].mxu0 %v380
      %v505 = vpop.f32.mrb[0].mxu0
      %v506 = vadd.f32 0.0, %v505
      %v507 = vpop.f32.mrb[0].mxu0
      %v508 = vpop.f32.mrb[0].mxu0
      %v509 = vadd.f32 0.0, %v508
      %v510 = vpop.f32.mrb[0].mxu0
      %511 = vmatprep.mubr.bf16.mxu0 0
      %512 = vmatmul.mubr.bf16.gmra.mrb[0].mxu0 %v383
      %v513 = vpop.f32.mrb[0].mxu0
      %v514 = vadd.f32 0.0, %v513
      %v515 = vpop.f32.mrb[0].mxu0
      %v516 = vpop.f32.mrb[0].mxu0
      %v517 = vadd.f32 0.0, %v516
      %v518 = vpop.f32.mrb[0].mxu0
      %519 = vmatprep.mubr.bf16.mxu0 0
      %520 = vmatmul.mubr.bf16.gmra.mrb[0].mxu0 %v386
      %v521 = vpop.f32.mrb[0].mxu0
      %v522 = vadd.f32 0.0, %v521
      %v523 = vpop.f32.mrb[0].mxu0
      %v524 = vpop.f32.mrb[0].mxu0
      %v525 = vadd.f32 0.0, %v524
      %v526 = vpop.f32.mrb[0].mxu0
      %527 = vmatprep.mubr.bf16.mxu0 0
      %528 = vmatmul.mubr.bf16.gmra.mrb[0].mxu0 %v389
      %v529 = vpop.f32.mrb[0].mxu0
      %v530 = vadd.f32 0.0, %v529
      %v531 = vpop.f32.mrb[0].mxu0
      %v532 = vpop.f32.mrb[0].mxu0
      %v533 = vadd.f32 0.0, %v532
      %v534 = vpop.f32.mrb[0].mxu0
      %535 = vmatprep.mubr.bf16.mxu0 0
      %536 = vmatmul.mubr.bf16.gmra.mrb[0].mxu0 %v392
      %v537 = vpop.f32.mrb[0].mxu0
      %v538 = vadd.f32 0.0, %v537
      %v539 = vpop.f32.mrb[0].mxu0
      %v540 = vpop.f32.mrb[0].mxu0
      %v541 = vadd.f32 0.0, %v540
      %v542 = vpop.f32.mrb[0].mxu0
      %543 = vmatprep.mubr.bf16.mxu0 0
      %544 = vmatmul.mubr.bf16.gmra.mrb[0].mxu0 %v395
      %v545 = vpop.f32.mrb[0].mxu0
      %v546 = vadd.f32 0.0, %v545
      %v547 = vpop.f32.mrb[0].mxu0
      %v548 = vpop.f32.mrb[0].mxu0
      %v549 = vadd.f32 0.0, %v548
      %v550 = vpop.f32.mrb[0].mxu0
      %551 = vmatprep.mubr.bf16.mxu0 0
      %552 = vmatmul.mubr.bf16.gmra.mrb[0].mxu0 %v398
      %v553 = vpop.f32.mrb[0].mxu0
      %v554 = vadd.f32 0.0, %v553
      %v555 = vpop.f32.mrb[0].mxu0
      %v556 = vpop.f32.mrb[0].mxu0
      %v557 = vadd.f32 0.0, %v556
      %v558 = vpop.f32.mrb[0].mxu0
      %559 = vmatprep.mubr.bf16.mxu0 0
      %560 = vmatmul.mubr.bf16.gmra.mrb[0].mxu0 %v401
      %v561 = vpop.f32.mrb[0].mxu0
      %v562 = vadd.f32 0.0, %v561
      %v563 = vpop.f32.mrb[0].mxu0
      %v564 = vpop.f32.mrb[0].mxu0
      %v565 = vadd.f32 0.0, %v564
      %v566 = vpop.f32.mrb[0].mxu0
      %567 = vdwg.mxu0
      %v568 = vld [vmem:[%s2] sm:$0x1]
      %v570 = vlaneseq
      %v571 = vshrl.u32 %v570, 7
      %v572 = vsub.s32 0, %v571
      %v573 = vrot.slane %v568, %v572
      %v575 = vmul.f32 %v442, %v573
      %v576 = vmul.f32 %v445, %v573
      %v577 = vmul.f32 %v450, %v573
      %v578 = vmul.f32 %v453, %v573
      %v579 = vmul.f32 %v458, %v573
      %v580 = vmul.f32 %v461, %v573
      %v581 = vmul.f32 %v466, %v573
      %v582 = vmul.f32 %v469, %v573
      %v583 = vmul.f32 %v474, %v573
      %v584 = vmul.f32 %v477, %v573
      %v585 = vmul.f32 %v482, %v573
      %v586 = vmul.f32 %v485, %v573
      %v587 = vmul.f32 %v490, %v573
      %v588 = vmul.f32 %v493, %v573
      %v589 = vmul.f32 %v498, %v573
      %v590 = vmul.f32 %v501, %v573
      %v591 = vmul.f32 %v506, %v573
      %v592 = vmul.f32 %v509, %v573
      %v593 = vmul.f32 %v514, %v573
      %v594 = vmul.f32 %v517, %v573
      %v595 = vmul.f32 %v522, %v573
      %v596 = vmul.f32 %v525, %v573
      %v597 = vmul.f32 %v530, %v573
      %v598 = vmul.f32 %v533, %v573
      %v599 = vmul.f32 %v538, %v573
      %v600 = vmul.f32 %v541, %v573
      %v601 = vmul.f32 %v546, %v573
      %v602 = vmul.f32 %v549, %v573
      %v603 = vmul.f32 %v554, %v573
      %v604 = vmul.f32 %v557, %v573
      %v605 = vmul.f32 %v562, %v573
      %v606 = vmul.f32 %v565, %v573
      %v607 = vld [vmem:[%s3] sm:$0x1]
      %v609 = vlaneseq
      %v610 = vshrl.u32 %v609, 7
      %v611 = vsub.s32 0, %v610
      %v612 = vrot.slane %v607, %v611
      %v614 = vadd.f32 %v575, %v612
      %v615 = vadd.f32 %v576, %v612
      %v616 = vadd.f32 %v577, %v612
      %v617 = vadd.f32 %v578, %v612
      %v618 = vadd.f32 %v579, %v612
      %v619 = vadd.f32 %v580, %v612
      %v620 = vadd.f32 %v581, %v612
      %v621 = vadd.f32 %v582, %v612
      %v622 = vadd.f32 %v583, %v612
      %v623 = vadd.f32 %v584, %v612
      %v624 = vadd.f32 %v585, %v612
      %v625 = vadd.f32 %v586, %v612
      %v626 = vadd.f32 %v587, %v612
      %v627 = vadd.f32 %v588, %v612
      %v628 = vadd.f32 %v589, %v612
      %v629 = vadd.f32 %v590, %v612
      %v630 = vadd.f32 %v591, %v612
      %v631 = vadd.f32 %v592, %v612
      %v632 = vadd.f32 %v593, %v612
      %v633 = vadd.f32 %v594, %v612
      %v634 = vadd.f32 %v595, %v612
      %v635 = vadd.f32 %v596, %v612
      %v636 = vadd.f32 %v597, %v612
      %v637 = vadd.f32 %v598, %v612
      %v638 = vadd.f32 %v599, %v612
      %v639 = vadd.f32 %v600, %v612
      %v640 = vadd.f32 %v601, %v612
      %v641 = vadd.f32 %v602, %v612
      %v642 = vadd.f32 %v603, %v612
      %v643 = vadd.f32 %v604, %v612
      %v644 = vadd.f32 %v605, %v612
      %v645 = vadd.f32 %v606, %v612
      %v646 = vmax.f32 %v614, 0.0
      %v647 = vmax.f32 %v615, 0.0
      %v648 = vmax.f32 %v616, 0.0
      %v649 = vmax.f32 %v617, 0.0
      %v650 = vmax.f32 %v618, 0.0
      %v651 = vmax.f32 %v619, 0.0
      %v652 = vmax.f32 %v620, 0.0
      %v653 = vmax.f32 %v621, 0.0
      %v654 = vmax.f32 %v622, 0.0
      %v655 = vmax.f32 %v623, 0.0
      %v656 = vmax.f32 %v624, 0.0
      %v657 = vmax.f32 %v625, 0.0
      %v658 = vmax.f32 %v626, 0.0
      %v659 = vmax.f32 %v627, 0.0
      %v660 = vmax.f32 %v628, 0.0
      %v661 = vmax.f32 %v629, 0.0
      %v662 = vmax.f32 %v630, 0.0
      %v663 = vmax.f32 %v631, 0.0
      %v664 = vmax.f32 %v632, 0.0
      %v665 = vmax.f32 %v633, 0.0
      %v666 = vmax.f32 %v634, 0.0
      %v667 = vmax.f32 %v635, 0.0
      %v668 = vmax.f32 %v636, 0.0
      %v669 = vmax.f32 %v637, 0.0
      %v670 = vmax.f32 %v638, 0.0
      %v671 = vmax.f32 %v639, 0.0
      %v672 = vmax.f32 %v640, 0.0
      %v673 = vmax.f32 %v641, 0.0
      %v674 = vmax.f32 %v642, 0.0
      %v675 = vmax.f32 %v643, 0.0
      %v676 = vmax.f32 %v644, 0.0
      %v677 = vmax.f32 %v645, 0.0
      %678 = vst.msk [vmem:[%s288] sm:$0xff] %vm280, %v646
      %679 = vst.msk [vmem:[%s288 + $0x8] sm:$0xff] %vm280, %v647
      %680 = vst.msk [vmem:[%s288 + $0x18] sm:$0xff] %vm280, %v648
      %681 = vst.msk [vmem:[%s288 + $0x20] sm:$0xff] %vm280, %v649
      %682 = vst.msk [vmem:[%s288 + $0x30] sm:$0xff] %vm280, %v650
      %683 = vst.msk [vmem:[%s288 + $0x38] sm:$0xff] %vm280, %v651
      %684 = vst.msk [vmem:[%s288 + $0x48] sm:$0xff] %vm280, %v652
      %685 = vst.msk [vmem:[%s288 + $0x50] sm:$0xff] %vm280, %v653
      %686 = vst.msk [vmem:[%s288 + $0x60] sm:$0xff] %vm280, %v654
      %687 = vst.msk [vmem:[%s288 + $0x68] sm:$0xff] %vm280, %v655
      %688 = vst.msk [vmem:[%s288 + $0x78] sm:$0xff] %vm280, %v656
      %689 = vst.msk [vmem:[%s288 + $0x80] sm:$0xff] %vm280, %v657
      %690 = vst.msk [vmem:[%s288 + $0x90] sm:$0xff] %vm280, %v658
      %691 = vst.msk [vmem:[%s288 + $0x98] sm:$0xff] %vm280, %v659
      %692 = vst.msk [vmem:[%s288 + $0xa8] sm:$0xff] %vm280, %v660
      %693 = vst.msk [vmem:[%s288 + $0xb0] sm:$0xff] %vm280, %v661
      %694 = vst.msk [vmem:[%s288 + $0xc0] sm:$0xff] %vm280, %v662
      %695 = vst.msk [vmem:[%s288 + $0xc8] sm:$0xff] %vm280, %v663
      %696 = vst.msk [vmem:[%s288 + $0xd8] sm:$0xff] %vm280, %v664
      %697 = vst.msk [vmem:[%s288 + $0xe0] sm:$0xff] %vm280, %v665
      %698 = vst.msk [vmem:[%s288 + $0xf0] sm:$0xff] %vm280, %v666
      %699 = vst.msk [vmem:[%s288 + $0xf8] sm:$0xff] %vm280, %v667
      %700 = vst.msk [vmem:[%s288 + $0x108] sm:$0xff] %vm280, %v668
      %701 = vst.msk [vmem:[%s288 + $0x110] sm:$0xff] %vm280, %v669
      %702 = vst.msk [vmem:[%s288 + $0x120] sm:$0xff] %vm280, %v670
      %703 = vst.msk [vmem:[%s288 + $0x128] sm:$0xff] %vm280, %v671
      %704 = vst.msk [vmem:[%s288 + $0x138] sm:$0xff] %vm280, %v672
      %705 = vst.msk [vmem:[%s288 + $0x140] sm:$0xff] %vm280, %v673
      %706 = vst.msk [vmem:[%s288 + $0x150] sm:$0xff] %vm280, %v674
      %707 = vst.msk [vmem:[%s288 + $0x158] sm:$0xff] %vm280, %v675
      %708 = vst.msk [vmem:[%s288 + $0x168] sm:$0xff] %vm280, %v676
      %709 = vst.msk [vmem:[%s288 + $0x170] sm:$0xff] %vm280, %v677
      %v710 = vld [vmem:[#allocation2] sm:$0xff]
      %v711 = vld [vmem:[#allocation2 + $0x8] sm:$0xff]
      %v712 = vld [vmem:[#allocation2 + $0x10] sm:$0xff]
      %v713 = vld [vmem:[#allocation2 + $0x18] sm:$0xff]
      %v714 = vld [vmem:[#allocation2 + $0x20] sm:$0xff]
      %v715 = vld [vmem:[#allocation2 + $0x28] sm:$0xff]
      %v716 = vld [vmem:[#allocation2 + $0x30] sm:$0xff]
      %v717 = vld [vmem:[#allocation2 + $0x38] sm:$0xff]
      %v718 = vld [vmem:[#allocation2 + $0x40] sm:$0xff]
      %v719 = vld [vmem:[#allocation2 + $0x48] sm:$0xff]
      %v720 = vld [vmem:[#allocation2 + $0x50] sm:$0xff]
      %v721 = vld [vmem:[#allocation2 + $0x58] sm:$0xff]
      %v722 = vld [vmem:[#allocation2 + $0x60] sm:$0xff]
      %v723 = vld [vmem:[#allocation2 + $0x68] sm:$0xff]
      %v724 = vld [vmem:[#allocation2 + $0x70] sm:$0xff]
      %v725 = vld [vmem:[#allocation2 + $0x78] sm:$0xff]
      %v726 = vld [vmem:[#allocation2 + $0x80] sm:$0xff]
      %v727 = vld [vmem:[#allocation2 + $0x88] sm:$0xff]
      %v728 = vld [vmem:[#allocation2 + $0x90] sm:$0xff]
      %v729 = vld [vmem:[#allocation2 + $0x98] sm:$0xff]
      %v730 = vld [vmem:[#allocation2 + $0xa0] sm:$0xff]
      %v731 = vld [vmem:[#allocation2 + $0xa8] sm:$0xff]
      %v732 = vld [vmem:[#allocation2 + $0xb0] sm:$0xff]
      %v733 = vld [vmem:[#allocation2 + $0xb8] sm:$0xff]
      %v734 = vld [vmem:[#allocation2 + $0xc0] sm:$0xff]
      %v735 = vld [vmem:[#allocation2 + $0xc8] sm:$0xff]
      %v736 = vld [vmem:[#allocation2 + $0xd0] sm:$0xff]
      %v737 = vld [vmem:[#allocation2 + $0xd8] sm:$0xff]
      %v738 = vld [vmem:[#allocation2 + $0xe0] sm:$0xff]
      %v739 = vld [vmem:[#allocation2 + $0xe8] sm:$0xff]
      %v740 = vld [vmem:[#allocation2 + $0xf0] sm:$0xff]
      %v741 = vld [vmem:[#allocation2 + $0xf8] sm:$0xff]
      %v742 = vld [vmem:[#allocation2 + $0x100] sm:$0xff]
      %v743 = vld [vmem:[#allocation2 + $0x108] sm:$0xff]
      %v744 = vld [vmem:[#allocation2 + $0x110] sm:$0xff]
      %v745 = vld [vmem:[#allocation2 + $0x118] sm:$0xff]
      %v746 = vld [vmem:[#allocation2 + $0x120] sm:$0xff]
      %v747 = vld [vmem:[#allocation2 + $0x128] sm:$0xff]
      %v748 = vld [vmem:[#allocation2 + $0x130] sm:$0xff]
      %v749 = vld [vmem:[#allocation2 + $0x138] sm:$0xff]
      %v750 = vld [vmem:[#allocation2 + $0x140] sm:$0xff]
      %v751 = vld [vmem:[#allocation2 + $0x148] sm:$0xff]
      %v752 = vld [vmem:[#allocation2 + $0x150] sm:$0xff]
      %v753 = vld [vmem:[#allocation2 + $0x158] sm:$0xff]
      %v754 = vld [vmem:[#allocation2 + $0x160] sm:$0xff]
      %v755 = vld [vmem:[#allocation2 + $0x168] sm:$0xff]
      %v756 = vld [vmem:[#allocation2 + $0x170] sm:$0xff]
      %v757 = vld [vmem:[#allocation2 + $0x178] sm:$0xff]
      %v758 = vld [vmem:[#allocation2 + $0x180] sm:$0xff]
      %v759 = vld [vmem:[#allocation2 + $0x188] sm:$0xff]
      %v760 = vld [vmem:[#allocation2 + $0x190] sm:$0xff]
      %v761 = vld [vmem:[#allocation2 + $0x198] sm:$0xff]
      %v762 = vld [vmem:[#allocation2 + $0x1a0] sm:$0xff]
      %v763 = vld [vmem:[#allocation2 + $0x1a8] sm:$0xff]
      %812 = vrot.lane.b32.xlu0 %v713, 8
      %v813 = vpop.permute.xlu0 %812
      %814 = vrot.lane.b32.xlu0 %v714, 8
      %v815 = vpop.permute.xlu0 %814
      %816 = vrot.lane.b32.xlu0 %v715, 8
      %v817 = vpop.permute.xlu0 %816
      %818 = vrot.lane.b32.xlu0 %v716, 8
      %v819 = vpop.permute.xlu0 %818
      %820 = vrot.lane.b32.xlu0 %v717, 8
      %v821 = vpop.permute.xlu0 %820
      %822 = vrot.lane.b32.xlu0 %v718, 8
      %v823 = vpop.permute.xlu0 %822
      %824 = vrot.lane.b32.xlu0 %v719, 8
      %v825 = vpop.permute.xlu0 %824
      %826 = vrot.lane.b32.xlu0 %v720, 8
      %v827 = vpop.permute.xlu0 %826
      %828 = vrot.lane.b32.xlu0 %v721, 8
      %v829 = vpop.permute.xlu0 %828
      %830 = vrot.lane.b32.xlu0 %v722, 8
      %v831 = vpop.permute.xlu0 %830
      %832 = vrot.lane.b32.xlu0 %v723, 8
      %v833 = vpop.permute.xlu0 %832
      %834 = vrot.lane.b32.xlu0 %v724, 8
      %v835 = vpop.permute.xlu0 %834
      %836 = vrot.lane.b32.xlu0 %v725, 8
      %v837 = vpop.permute.xlu0 %836
      %838 = vrot.lane.b32.xlu0 %v726, 8
      %v839 = vpop.permute.xlu0 %838
      %840 = vrot.lane.b32.xlu0 %v727, 8
      %v841 = vpop.permute.xlu0 %840
      %842 = vrot.lane.b32.xlu0 %v728, 8
      %v843 = vpop.permute.xlu0 %842
      %844 = vrot.lane.b32.xlu0 %v729, 8
      %v845 = vpop.permute.xlu0 %844
      %846 = vrot.lane.b32.xlu0 %v730, 8
      %v847 = vpop.permute.xlu0 %846
      %848 = vrot.lane.b32.xlu0 %v731, 8
      %v849 = vpop.permute.xlu0 %848
      %850 = vrot.lane.b32.xlu0 %v732, 8
      %v851 = vpop.permute.xlu0 %850
      %852 = vrot.lane.b32.xlu0 %v733, 8
      %v853 = vpop.permute.xlu0 %852
      %854 = vrot.lane.b32.xlu0 %v734, 8
      %v855 = vpop.permute.xlu0 %854
      %856 = vrot.lane.b32.xlu0 %v735, 8
      %v857 = vpop.permute.xlu0 %856
      %858 = vrot.lane.b32.xlu0 %v736, 8
      %v859 = vpop.permute.xlu0 %858
      %860 = vrot.lane.b32.xlu0 %v737, 8
      %v861 = vpop.permute.xlu0 %860
      %862 = vrot.lane.b32.xlu0 %v738, 8
      %v863 = vpop.permute.xlu0 %862
      %864 = vrot.lane.b32.xlu0 %v739, 8
      %v865 = vpop.permute.xlu0 %864
      %866 = vrot.lane.b32.xlu0 %v740, 8
      %v867 = vpop.permute.xlu0 %866
      %868 = vrot.lane.b32.xlu0 %v741, 8
      %v869 = vpop.permute.xlu0 %868
      %870 = vrot.lane.b32.xlu0 %v742, 8
      %v871 = vpop.permute.xlu0 %870
      %872 = vrot.lane.b32.xlu0 %v743, 8
      %v873 = vpop.permute.xlu0 %872
      %874 = vrot.lane.b32.xlu0 %v744, 8
      %v875 = vpop.permute.xlu0 %874
      %876 = vrot.lane.b32.xlu0 %v745, 8
      %v877 = vpop.permute.xlu0 %876
      %878 = vrot.lane.b32.xlu0 %v746, 8
      %v879 = vpop.permute.xlu0 %878
      %880 = vrot.lane.b32.xlu0 %v747, 8
      %v881 = vpop.permute.xlu0 %880
      %882 = vrot.lane.b32.xlu0 %v748, 8
      %v883 = vpop.permute.xlu0 %882
      %884 = vrot.lane.b32.xlu0 %v749, 8
      %v885 = vpop.permute.xlu0 %884
      %886 = vrot.lane.b32.xlu0 %v750, 8
      %v887 = vpop.permute.xlu0 %886
      %888 = vrot.lane.b32.xlu0 %v751, 8
      %v889 = vpop.permute.xlu0 %888
      %890 = vrot.lane.b32.xlu0 %v752, 8
      %v891 = vpop.permute.xlu0 %890
      %892 = vrot.lane.b32.xlu0 %v753, 8
      %v893 = vpop.permute.xlu0 %892
      %894 = vrot.lane.b32.xlu0 %v754, 8
      %v895 = vpop.permute.xlu0 %894
      %896 = vrot.lane.b32.xlu0 %v755, 8
      %v897 = vpop.permute.xlu0 %896
      %898 = vrot.lane.b32.xlu0 %v756, 8
      %v899 = vpop.permute.xlu0 %898
      %900 = vrot.lane.b32.xlu0 %v757, 8
      %v901 = vpop.permute.xlu0 %900
      %902 = vrot.lane.b32.xlu0 %v758, 8
      %v903 = vpop.permute.xlu0 %902
      %904 = vrot.lane.b32.xlu0 %v759, 8
      %v905 = vpop.permute.xlu0 %904
      %906 = vrot.lane.b32.xlu0 %v760, 8
      %v907 = vpop.permute.xlu0 %906
      %959 = vrot.lane.b32.xlu0 %v716, 16
      %v960 = vpop.permute.xlu0 %959
      %961 = vrot.lane.b32.xlu0 %v717, 16
      %v962 = vpop.permute.xlu0 %961
      %963 = vrot.lane.b32.xlu0 %v718, 16
      %v964 = vpop.permute.xlu0 %963
      %965 = vrot.lane.b32.xlu0 %v719, 16
      %v966 = vpop.permute.xlu0 %965
      %967 = vrot.lane.b32.xlu0 %v720, 16
      %v968 = vpop.permute.xlu0 %967
      %969 = vrot.lane.b32.xlu0 %v721, 16
      %v970 = vpop.permute.xlu0 %969
      %971 = vrot.lane.b32.xlu0 %v722, 16
      %v972 = vpop.permute.xlu0 %971
      %973 = vrot.lane.b32.xlu0 %v723, 16
      %v974 = vpop.permute.xlu0 %973
      %975 = vrot.lane.b32.xlu0 %v724, 16
      %v976 = vpop.permute.xlu0 %975
      %977 = vrot.lane.b32.xlu0 %v725, 16
      %v978 = vpop.permute.xlu0 %977
      %979 = vrot.lane.b32.xlu0 %v726, 16
      %v980 = vpop.permute.xlu0 %979
      %981 = vrot.lane.b32.xlu0 %v727, 16
      %v982 = vpop.permute.xlu0 %981
      %983 = vrot.lane.b32.xlu0 %v728, 16
      %v984 = vpop.permute.xlu0 %983
      %985 = vrot.lane.b32.xlu0 %v729, 16
      %v986 = vpop.permute.xlu0 %985
      %987 = vrot.lane.b32.xlu0 %v730, 16
      %v988 = vpop.permute.xlu0 %987
      %989 = vrot.lane.b32.xlu0 %v731, 16
      %v990 = vpop.permute.xlu0 %989
      %991 = vrot.lane.b32.xlu0 %v732, 16
      %v992 = vpop.permute.xlu0 %991
      %993 = vrot.lane.b32.xlu0 %v733, 16
      %v994 = vpop.permute.xlu0 %993
      %995 = vrot.lane.b32.xlu0 %v734, 16
      %v996 = vpop.permute.xlu0 %995
      %997 = vrot.lane.b32.xlu0 %v735, 16
      %v998 = vpop.permute.xlu0 %997
      %999 = vrot.lane.b32.xlu0 %v736, 16
      %v1000 = vpop.permute.xlu0 %999
      %1001 = vrot.lane.b32.xlu0 %v737, 16
      %v1002 = vpop.permute.xlu0 %1001
      %1003 = vrot.lane.b32.xlu0 %v738, 16
      %v1004 = vpop.permute.xlu0 %1003
      %1005 = vrot.lane.b32.xlu0 %v739, 16
      %v1006 = vpop.permute.xlu0 %1005
      %1007 = vrot.lane.b32.xlu0 %v740, 16
      %v1008 = vpop.permute.xlu0 %1007
      %1009 = vrot.lane.b32.xlu0 %v741, 16
      %v1010 = vpop.permute.xlu0 %1009
      %1011 = vrot.lane.b32.xlu0 %v742, 16
      %v1012 = vpop.permute.xlu0 %1011
      %1013 = vrot.lane.b32.xlu0 %v743, 16
      %v1014 = vpop.permute.xlu0 %1013
      %1015 = vrot.lane.b32.xlu0 %v744, 16
      %v1016 = vpop.permute.xlu0 %1015
      %1017 = vrot.lane.b32.xlu0 %v745, 16
      %v1018 = vpop.permute.xlu0 %1017
      %1019 = vrot.lane.b32.xlu0 %v746, 16
      %v1020 = vpop.permute.xlu0 %1019
      %1021 = vrot.lane.b32.xlu0 %v747, 16
      %v1022 = vpop.permute.xlu0 %1021
      %1023 = vrot.lane.b32.xlu0 %v748, 16
      %v1024 = vpop.permute.xlu0 %1023
      %1025 = vrot.lane.b32.xlu0 %v749, 16
      %v1026 = vpop.permute.xlu0 %1025
      %1027 = vrot.lane.b32.xlu0 %v750, 16
      %v1028 = vpop.permute.xlu0 %1027
      %1029 = vrot.lane.b32.xlu0 %v751, 16
      %v1030 = vpop.permute.xlu0 %1029
      %1031 = vrot.lane.b32.xlu0 %v752, 16
      %v1032 = vpop.permute.xlu0 %1031
      %1033 = vrot.lane.b32.xlu0 %v753, 16
      %v1034 = vpop.permute.xlu0 %1033
      %1035 = vrot.lane.b32.xlu0 %v754, 16
      %v1036 = vpop.permute.xlu0 %1035
      %1037 = vrot.lane.b32.xlu0 %v755, 16
      %v1038 = vpop.permute.xlu0 %1037
      %1039 = vrot.lane.b32.xlu0 %v756, 16
      %v1040 = vpop.permute.xlu0 %1039
      %1041 = vrot.lane.b32.xlu0 %v757, 16
      %v1042 = vpop.permute.xlu0 %1041
      %1043 = vrot.lane.b32.xlu0 %v758, 16
      %v1044 = vpop.permute.xlu0 %1043
      %1045 = vrot.lane.b32.xlu0 %v759, 16
      %v1046 = vpop.permute.xlu0 %1045
      %1047 = vrot.lane.b32.xlu0 %v760, 16
      %v1048 = vpop.permute.xlu0 %1047
      %1049 = vrot.lane.b32.xlu0 %v761, 16
      %v1050 = vpop.permute.xlu0 %1049
      %1051 = vrot.lane.b32.xlu0 %v762, 16
      %v1052 = vpop.permute.xlu0 %1051
      %1053 = vrot.lane.b32.xlu0 %v763, 16
      %v1054 = vpop.permute.xlu0 %1053
      %v1103 = vsel %vm280, %v710, %v813
      %v1104 = vsel %vm280, %v711, %v815
      %v1105 = vsel %vm280, %v712, %v817
      %v1106 = vsel %vm280, %v713, %v819
      %v1107 = vsel %vm280, %v714, %v821
      %v1108 = vsel %vm280, %v715, %v823
      %v1109 = vsel %vm280, %v716, %v825
      %v1110 = vsel %vm280, %v717, %v827
      %v1111 = vsel %vm280, %v718, %v829
      %v1112 = vsel %vm280, %v719, %v831
      %v1113 = vsel %vm280, %v720, %v833
      %v1114 = vsel %vm280, %v721, %v835
      %v1115 = vsel %vm280, %v722, %v837
      %v1116 = vsel %vm280, %v723, %v839
      %v1117 = vsel %vm280, %v724, %v841
      %v1118 = vsel %vm280, %v725, %v843
      %v1119 = vsel %vm280, %v726, %v845
      %v1120 = vsel %vm280, %v727, %v847
      %v1121 = vsel %vm280, %v728, %v849
      %v1122 = vsel %vm280, %v729, %v851
      %v1123 = vsel %vm280, %v730, %v853
      %v1124 = vsel %vm280, %v731, %v855
      %v1125 = vsel %vm280, %v732, %v857
      %v1126 = vsel %vm280, %v733, %v859
      %v1127 = vsel %vm280, %v734, %v861
      %v1128 = vsel %vm280, %v735, %v863
      %v1129 = vsel %vm280, %v736, %v865
      %v1130 = vsel %vm280, %v737, %v867
      %v1131 = vsel %vm280, %v738, %v869
      %v1132 = vsel %vm280, %v739, %v871
      %v1133 = vsel %vm280, %v740, %v873
      %v1134 = vsel %vm280, %v741, %v875
      %v1135 = vsel %vm280, %v742, %v877
      %v1136 = vsel %vm280, %v743, %v879
      %v1137 = vsel %vm280, %v744, %v881
      %v1138 = vsel %vm280, %v745, %v883
      %v1139 = vsel %vm280, %v746, %v885
      %v1140 = vsel %vm280, %v747, %v887
      %v1141 = vsel %vm280, %v748, %v889
      %v1142 = vsel %vm280, %v749, %v891
      %v1143 = vsel %vm280, %v750, %v893
      %v1144 = vsel %vm280, %v751, %v895
      %v1145 = vsel %vm280, %v752, %v897
      %v1146 = vsel %vm280, %v753, %v899
      %v1147 = vsel %vm280, %v754, %v901
      %v1148 = vsel %vm280, %v755, %v903
      %v1149 = vsel %vm280, %v756, %v905
      %v1150 = vsel %vm280, %v757, %v907
      %vm1151 = vcmask 130048
      %v1152 = vsel %vm1151, %v1103, %v960
      %v1153 = vsel %vm1151, %v1104, %v962
      %v1154 = vsel %vm1151, %v1105, %v964
      %v1155 = vsel %vm1151, %v1106, %v966
      %v1156 = vsel %vm1151, %v1107, %v968
      %v1157 = vsel %vm1151, %v1108, %v970
      %v1158 = vsel %vm1151, %v1109, %v972
      %v1159 = vsel %vm1151, %v1110, %v974
      %v1160 = vsel %vm1151, %v1111, %v976
      %v1161 = vsel %vm1151, %v1112, %v978
      %v1162 = vsel %vm1151, %v1113, %v980
      %v1163 = vsel %vm1151, %v1114, %v982
      %v1164 = vsel %vm1151, %v1115, %v984
      %v1165 = vsel %vm1151, %v1116, %v986
      %v1166 = vsel %vm1151, %v1117, %v988
      %v1167 = vsel %vm1151, %v1118, %v990
      %v1168 = vsel %vm1151, %v1119, %v992
      %v1169 = vsel %vm1151, %v1120, %v994
      %v1170 = vsel %vm1151, %v1121, %v996
      %v1171 = vsel %vm1151, %v1122, %v998
      %v1172 = vsel %vm1151, %v1123, %v1000
      %v1173 = vsel %vm1151, %v1124, %v1002
      %v1174 = vsel %vm1151, %v1125, %v1004
      %v1175 = vsel %vm1151, %v1126, %v1006
      %v1176 = vsel %vm1151, %v1127, %v1008
      %v1177 = vsel %vm1151, %v1128, %v1010
      %v1178 = vsel %vm1151, %v1129, %v1012
      %v1179 = vsel %vm1151, %v1130, %v1014
      %v1180 = vsel %vm1151, %v1131, %v1016
      %v1181 = vsel %vm1151, %v1132, %v1018
      %v1182 = vsel %vm1151, %v1133, %v1020
      %v1183 = vsel %vm1151, %v1134, %v1022
      %v1184 = vsel %vm1151, %v1135, %v1024
      %v1185 = vsel %vm1151, %v1136, %v1026
      %v1186 = vsel %vm1151, %v1137, %v1028
      %v1187 = vsel %vm1151, %v1138, %v1030
      %v1188 = vsel %vm1151, %v1139, %v1032
      %v1189 = vsel %vm1151, %v1140, %v1034
      %v1190 = vsel %vm1151, %v1141, %v1036
      %v1191 = vsel %vm1151, %v1142, %v1038
      %v1192 = vsel %vm1151, %v1143, %v1040
      %v1193 = vsel %vm1151, %v1144, %v1042
      %v1194 = vsel %vm1151, %v1145, %v1044
      %v1195 = vsel %vm1151, %v1146, %v1046
      %v1196 = vsel %vm1151, %v1147, %v1048
      %v1197 = vsel %vm1151, %v1148, %v1050
      %v1198 = vsel %vm1151, %v1149, %v1052
      %v1199 = vsel %vm1151, %v1150, %v1054
      %v1200 = vrot.slane %v1152, 7
      %v1201 = vrot.slane %v1153, 7
      %v1202 = vrot.slane %v1154, 7
      %v1203 = vrot.slane %v1155, 7
      %v1204 = vrot.slane %v1156, 7
      %v1205 = vrot.slane %v1157, 7
      %v1206 = vrot.slane %v1158, 7
      %v1207 = vrot.slane %v1159, 7
      %v1208 = vrot.slane %v1160, 7
      %v1209 = vrot.slane %v1161, 7
      %v1210 = vrot.slane %v1162, 7
      %v1211 = vrot.slane %v1163, 7
      %v1212 = vrot.slane %v1164, 7
      %v1213 = vrot.slane %v1165, 7
      %v1214 = vrot.slane %v1166, 7
      %v1215 = vrot.slane %v1167, 7
      %v1216 = vrot.slane %v1168, 7
      %v1217 = vrot.slane %v1169, 7
      %v1218 = vrot.slane %v1170, 7
      %v1219 = vrot.slane %v1171, 7
      %v1220 = vrot.slane %v1172, 7
      %v1221 = vrot.slane %v1173, 7
      %v1222 = vrot.slane %v1174, 7
      %v1223 = vrot.slane %v1175, 7
      %v1224 = vrot.slane %v1176, 7
      %v1225 = vrot.slane %v1177, 7
      %v1226 = vrot.slane %v1178, 7
      %v1227 = vrot.slane %v1179, 7
      %v1228 = vrot.slane %v1180, 7
      %v1229 = vrot.slane %v1181, 7
      %v1230 = vrot.slane %v1182, 7
      %v1231 = vrot.slane %v1183, 7
      %v1232 = vrot.slane %v1184, 7
      %v1233 = vrot.slane %v1185, 7
      %v1234 = vrot.slane %v1186, 7
      %v1235 = vrot.slane %v1187, 7
      %v1236 = vrot.slane %v1188, 7
      %v1237 = vrot.slane %v1189, 7
      %v1238 = vrot.slane %v1190, 7
      %v1239 = vrot.slane %v1191, 7
      %v1240 = vrot.slane %v1192, 7
      %v1241 = vrot.slane %v1193, 7
      %v1242 = vrot.slane %v1194, 7
      %v1243 = vrot.slane %v1195, 7
      %v1244 = vrot.slane %v1196, 7
      %v1245 = vrot.slane %v1197, 7
      %v1246 = vrot.slane %v1198, 7
      %v1247 = vrot.slane %v1199, 7
      %v1248 = vlaneseq
      %v1249 = vshrl.u32 %v1248, 7
      %vm1250 = vcmp.lt.s32.totalorder %v1249, 1
      %v1251 = vsel %vm1250, %v1246, %v1247
      %v1252 = vsel %vm1250, %v1245, %v1246
      %v1253 = vsel %vm1250, %v1244, %v1245
      %v1254 = vsel %vm1250, %v1243, %v1244
      %v1255 = vsel %vm1250, %v1242, %v1243
      %v1256 = vsel %vm1250, %v1241, %v1242
      %v1257 = vsel %vm1250, %v1240, %v1241
      %v1258 = vsel %vm1250, %v1239, %v1240
      %v1259 = vsel %vm1250, %v1238, %v1239
      %v1260 = vsel %vm1250, %v1237, %v1238
      %v1261 = vsel %vm1250, %v1236, %v1237
      %v1262 = vsel %vm1250, %v1235, %v1236
      %v1263 = vsel %vm1250, %v1234, %v1235
      %v1264 = vsel %vm1250, %v1233, %v1234
      %v1265 = vsel %vm1250, %v1232, %v1233
      %v1266 = vsel %vm1250, %v1231, %v1232
      %v1267 = vsel %vm1250, %v1230, %v1231
      %v1268 = vsel %vm1250, %v1229, %v1230
      %v1269 = vsel %vm1250, %v1228, %v1229
      %v1270 = vsel %vm1250, %v1227, %v1228
      %v1271 = vsel %vm1250, %v1226, %v1227
      %v1272 = vsel %vm1250, %v1225, %v1226
      %v1273 = vsel %vm1250, %v1224, %v1225
      %v1274 = vsel %vm1250, %v1223, %v1224
      %v1275 = vsel %vm1250, %v1222, %v1223
      %v1276 = vsel %vm1250, %v1221, %v1222
      %v1277 = vsel %vm1250, %v1220, %v1221
      %v1278 = vsel %vm1250, %v1219, %v1220
      %v1279 = vsel %vm1250, %v1218, %v1219
      %v1280 = vsel %vm1250, %v1217, %v1218
      %v1281 = vsel %vm1250, %v1216, %v1217
      %v1282 = vsel %vm1250, %v1215, %v1216
      %v1283 = vsel %vm1250, %v1214, %v1215
      %v1284 = vsel %vm1250, %v1213, %v1214
      %v1285 = vsel %vm1250, %v1212, %v1213
      %v1286 = vsel %vm1250, %v1211, %v1212
      %v1287 = vsel %vm1250, %v1210, %v1211
      %v1288 = vsel %vm1250, %v1209, %v1210
      %v1289 = vsel %vm1250, %v1208, %v1209
      %v1290 = vsel %vm1250, %v1207, %v1208
      %v1291 = vsel %vm1250, %v1206, %v1207
      %v1292 = vsel %vm1250, %v1205, %v1206
      %v1293 = vsel %vm1250, %v1204, %v1205
      %v1294 = vsel %vm1250, %v1203, %v1204
      %v1295 = vsel %vm1250, %v1202, %v1203
      %v1296 = vsel %vm1250, %v1201, %v1202
      %v1297 = vsel %vm1250, %v1200, %v1201
      %v1298 = vsel %vm1250, %v1247, %v1200
      %v1299 = vpack.c.bf16 %v1297, %v1298
      %v1300 = vpack.c.bf16 %v1295, %v1296
      %v1301 = vpack.c.bf16 %v1293, %v1294
      %v1302 = vpack.c.bf16 %v1291, %v1292
      %v1303 = vpack.c.bf16 %v1289, %v1290
      %v1304 = vpack.c.bf16 %v1287, %v1288
      %v1305 = vpack.c.bf16 %v1285, %v1286
      %v1306 = vpack.c.bf16 %v1283, %v1284
      %v1307 = vpack.c.bf16 %v1281, %v1282
      %v1308 = vpack.c.bf16 %v1279, %v1280
      %v1309 = vpack.c.bf16 %v1277, %v1278
      %v1310 = vpack.c.bf16 %v1275, %v1276
      %v1311 = vpack.c.bf16 %v1273, %v1274
      %v1312 = vpack.c.bf16 %v1271, %v1272
      %v1313 = vpack.c.bf16 %v1269, %v1270
      %v1314 = vpack.c.bf16 %v1267, %v1268
      %v1315 = vpack.c.bf16 %v1265, %v1266
      %v1316 = vpack.c.bf16 %v1263, %v1264
      %v1317 = vpack.c.bf16 %v1261, %v1262
      %v1318 = vpack.c.bf16 %v1259, %v1260
      %v1319 = vpack.c.bf16 %v1257, %v1258
      %v1320 = vpack.c.bf16 %v1255, %v1256
      %v1321 = vpack.c.bf16 %v1253, %v1254
      %v1322 = vpack.c.bf16 %v1251, %v1252
      %v1323 = vpack.c.bf16 %v1153, %v1152
      %v1324 = vpack.c.bf16 %v1155, %v1154
      %v1325 = vpack.c.bf16 %v1157, %v1156
      %v1326 = vpack.c.bf16 %v1159, %v1158
      %v1327 = vpack.c.bf16 %v1161, %v1160
      %v1328 = vpack.c.bf16 %v1163, %v1162
      %v1329 = vpack.c.bf16 %v1165, %v1164
      %v1330 = vpack.c.bf16 %v1167, %v1166
      %v1331 = vpack.c.bf16 %v1169, %v1168
      %v1332 = vpack.c.bf16 %v1171, %v1170
      %v1333 = vpack.c.bf16 %v1173, %v1172
      %v1334 = vpack.c.bf16 %v1175, %v1174
      %v1335 = vpack.c.bf16 %v1177, %v1176
      %v1336 = vpack.c.bf16 %v1179, %v1178
      %v1337 = vpack.c.bf16 %v1181, %v1180
      %v1338 = vpack.c.bf16 %v1183, %v1182
      %v1339 = vpack.c.bf16 %v1185, %v1184
      %v1340 = vpack.c.bf16 %v1187, %v1186
      %v1341 = vpack.c.bf16 %v1189, %v1188
      %v1342 = vpack.c.bf16 %v1191, %v1190
      %v1343 = vpack.c.bf16 %v1193, %v1192
      %v1344 = vpack.c.bf16 %v1195, %v1194
      %v1345 = vpack.c.bf16 %v1197, %v1196
      %v1346 = vpack.c.bf16 %v1199, %v1198
      %v1347 = vrot.slane %v1152, 1
      %v1348 = vrot.slane %v1153, 1
      %v1349 = vrot.slane %v1154, 1
      %v1350 = vrot.slane %v1155, 1
      %v1351 = vrot.slane %v1156, 1
      %v1352 = vrot.slane %v1157, 1
      %v1353 = vrot.slane %v1158, 1
      %v1354 = vrot.slane %v1159, 1
      %v1355 = vrot.slane %v1160, 1
      %v1356 = vrot.slane %v1161, 1
      %v1357 = vrot.slane %v1162, 1
      %v1358 = vrot.slane %v1163, 1
      %v1359 = vrot.slane %v1164, 1
      %v1360 = vrot.slane %v1165, 1
      %v1361 = vrot.slane %v1166, 1
      %v1362 = vrot.slane %v1167, 1
      %v1363 = vrot.slane %v1168, 1
      %v1364 = vrot.slane %v1169, 1
      %v1365 = vrot.slane %v1170, 1
      %v1366 = vrot.slane %v1171, 1
      %v1367 = vrot.slane %v1172, 1
      %v1368 = vrot.slane %v1173, 1
      %v1369 = vrot.slane %v1174, 1
      %v1370 = vrot.slane %v1175, 1
      %v1371 = vrot.slane %v1176, 1
      %v1372 = vrot.slane %v1177, 1
      %v1373 = vrot.slane %v1178, 1
      %v1374 = vrot.slane %v1179, 1
      %v1375 = vrot.slane %v1180, 1
      %v1376 = vrot.slane %v1181, 1
      %v1377 = vrot.slane %v1182, 1
      %v1378 = vrot.slane %v1183, 1
      %v1379 = vrot.slane %v1184, 1
      %v1380 = vrot.slane %v1185, 1
      %v1381 = vrot.slane %v1186, 1
      %v1382 = vrot.slane %v1187, 1
      %v1383 = vrot.slane %v1188, 1
      %v1384 = vrot.slane %v1189, 1
      %v1385 = vrot.slane %v1190, 1
      %v1386 = vrot.slane %v1191, 1
      %v1387 = vrot.slane %v1192, 1
      %v1388 = vrot.slane %v1193, 1
      %v1389 = vrot.slane %v1194, 1
      %v1390 = vrot.slane %v1195, 1
      %v1391 = vrot.slane %v1196, 1
      %v1392 = vrot.slane %v1197, 1
      %v1393 = vrot.slane %v1198, 1
      %v1394 = vrot.slane %v1199, 1
      %vm1395 = vcmp.lt.s32.totalorder %v1249, 7
      %v1396 = vsel %vm1395, %v1393, %v1394
      %v1397 = vsel %vm1395, %v1392, %v1393
      %v1398 = vsel %vm1395, %v1391, %v1392
      %v1399 = vsel %vm1395, %v1390, %v1391
      %v1400 = vsel %vm1395, %v1389, %v1390
      %v1401 = vsel %vm1395, %v1388, %v1389
      %v1402 = vsel %vm1395, %v1387, %v1388
      %v1403 = vsel %vm1395, %v1386, %v1387
      %v1404 = vsel %vm1395, %v1385, %v1386
      %v1405 = vsel %vm1395, %v1384, %v1385
      %v1406 = vsel %vm1395, %v1383, %v1384
      %v1407 = vsel %vm1395, %v1382, %v1383
      %v1408 = vsel %vm1395, %v1381, %v1382
      %v1409 = vsel %vm1395, %v1380, %v1381
      %v1410 = vsel %vm1395, %v1379, %v1380
      %v1411 = vsel %vm1395, %v1378, %v1379
      %v1412 = vsel %vm1395, %v1377, %v1378
      %v1413 = vsel %vm1395, %v1376, %v1377
      %v1414 = vsel %vm1395, %v1375, %v1376
      %v1415 = vsel %vm1395, %v1374, %v1375
      %v1416 = vsel %vm1395, %v1373, %v1374
      %v1417 = vsel %vm1395, %v1372, %v1373
      %v1418 = vsel %vm1395, %v1371, %v1372
      %v1419 = vsel %vm1395, %v1370, %v1371
      %v1420 = vsel %vm1395, %v1369, %v1370
      %v1421 = vsel %vm1395, %v1368, %v1369
      %v1422 = vsel %vm1395, %v1367, %v1368
      %v1423 = vsel %vm1395, %v1366, %v1367
      %v1424 = vsel %vm1395, %v1365, %v1366
      %v1425 = vsel %vm1395, %v1364, %v1365
      %v1426 = vsel %vm1395, %v1363, %v1364
      %v1427 = vsel %vm1395, %v1362, %v1363
      %v1428 = vsel %vm1395, %v1361, %v1362
      %v1429 = vsel %vm1395, %v1360, %v1361
      %v1430 = vsel %vm1395, %v1359, %v1360
      %v1431 = vsel %vm1395, %v1358, %v1359
      %v1432 = vsel %vm1395, %v1357, %v1358
      %v1433 = vsel %vm1395, %v1356, %v1357
      %v1434 = vsel %vm1395, %v1355, %v1356
      %v1435 = vsel %vm1395, %v1354, %v1355
      %v1436 = vsel %vm1395, %v1353, %v1354
      %v1437 = vsel %vm1395, %v1352, %v1353
      %v1438 = vsel %vm1395, %v1351, %v1352
      %v1439 = vsel %vm1395, %v1350, %v1351
      %v1440 = vsel %vm1395, %v1349, %v1350
      %v1441 = vsel %vm1395, %v1348, %v1349
      %v1442 = vsel %vm1395, %v1347, %v1348
      %v1443 = vsel %vm1395, %v1394, %v1347
      %v1444 = vpack.c.bf16 %v1441, %v1442
      %v1445 = vpack.c.bf16 %v1439, %v1440
      %v1446 = vpack.c.bf16 %v1437, %v1438
      %v1447 = vpack.c.bf16 %v1435, %v1436
      %v1448 = vpack.c.bf16 %v1433, %v1434
      %v1449 = vpack.c.bf16 %v1431, %v1432
      %v1450 = vpack.c.bf16 %v1429, %v1430
      %v1451 = vpack.c.bf16 %v1427, %v1428
      %v1452 = vpack.c.bf16 %v1425, %v1426
      %v1453 = vpack.c.bf16 %v1423, %v1424
      %v1454 = vpack.c.bf16 %v1421, %v1422
      %v1455 = vpack.c.bf16 %v1419, %v1420
      %v1456 = vpack.c.bf16 %v1417, %v1418
      %v1457 = vpack.c.bf16 %v1415, %v1416
      %v1458 = vpack.c.bf16 %v1413, %v1414
      %v1459 = vpack.c.bf16 %v1411, %v1412
      %v1460 = vpack.c.bf16 %v1409, %v1410
      %v1461 = vpack.c.bf16 %v1407, %v1408
      %v1462 = vpack.c.bf16 %v1405, %v1406
      %v1463 = vpack.c.bf16 %v1403, %v1404
      %v1464 = vpack.c.bf16 %v1401, %v1402
      %v1465 = vpack.c.bf16 %v1399, %v1400
      %v1466 = vpack.c.bf16 %v1397, %v1398
      %v1467 = vpack.c.bf16 %v1443, %v1396
      %1492 = vrot.lane.b32.xlu0 %v1323, 24
      %v1493 = vpop.permute.xlu0 %1492
      %1494 = vrot.lane.b32.xlu0 %v1324, 24
      %v1495 = vpop.permute.xlu0 %1494
      %1496 = vrot.lane.b32.xlu0 %v1325, 24
      %v1497 = vpop.permute.xlu0 %1496
      %1498 = vrot.lane.b32.xlu0 %v1326, 24
      %v1499 = vpop.permute.xlu0 %1498
      %1500 = vrot.lane.b32.xlu0 %v1327, 24
      %v1501 = vpop.permute.xlu0 %1500
      %1502 = vrot.lane.b32.xlu0 %v1328, 24
      %v1503 = vpop.permute.xlu0 %1502
      %1504 = vrot.lane.b32.xlu0 %v1329, 24
      %v1505 = vpop.permute.xlu0 %1504
      %1506 = vrot.lane.b32.xlu0 %v1330, 24
      %v1507 = vpop.permute.xlu0 %1506
      %1508 = vrot.lane.b32.xlu0 %v1331, 24
      %v1509 = vpop.permute.xlu0 %1508
      %1510 = vrot.lane.b32.xlu0 %v1332, 24
      %v1511 = vpop.permute.xlu0 %1510
      %1512 = vrot.lane.b32.xlu0 %v1333, 24
      %v1513 = vpop.permute.xlu0 %1512
      %1514 = vrot.lane.b32.xlu0 %v1334, 24
      %v1515 = vpop.permute.xlu0 %1514
      %1516 = vrot.lane.b32.xlu0 %v1335, 24
      %v1517 = vpop.permute.xlu0 %1516
      %1518 = vrot.lane.b32.xlu0 %v1336, 24
      %v1519 = vpop.permute.xlu0 %1518
      %1520 = vrot.lane.b32.xlu0 %v1337, 24
      %v1521 = vpop.permute.xlu0 %1520
      %1522 = vrot.lane.b32.xlu0 %v1338, 24
      %v1523 = vpop.permute.xlu0 %1522
      %1524 = vrot.lane.b32.xlu0 %v1339, 24
      %v1525 = vpop.permute.xlu0 %1524
      %1526 = vrot.lane.b32.xlu0 %v1340, 24
      %v1527 = vpop.permute.xlu0 %1526
      %1528 = vrot.lane.b32.xlu0 %v1341, 24
      %v1529 = vpop.permute.xlu0 %1528
      %1530 = vrot.lane.b32.xlu0 %v1342, 24
      %v1531 = vpop.permute.xlu0 %1530
      %1532 = vrot.lane.b32.xlu0 %v1343, 24
      %v1533 = vpop.permute.xlu0 %1532
      %1534 = vrot.lane.b32.xlu0 %v1344, 24
      %v1535 = vpop.permute.xlu0 %1534
      %1536 = vrot.lane.b32.xlu0 %v1345, 24
      %v1537 = vpop.permute.xlu0 %1536
      %1538 = vrot.lane.b32.xlu0 %v1346, 24
      %v1539 = vpop.permute.xlu0 %1538
      %1564 = vrot.lane.b32.xlu0 %v1444, 48
      %v1565 = vpop.permute.xlu0 %1564
      %1566 = vrot.lane.b32.xlu0 %v1445, 48
      %v1567 = vpop.permute.xlu0 %1566
      %1568 = vrot.lane.b32.xlu0 %v1446, 48
      %v1569 = vpop.permute.xlu0 %1568
      %1570 = vrot.lane.b32.xlu0 %v1447, 48
      %v1571 = vpop.permute.xlu0 %1570
      %1572 = vrot.lane.b32.xlu0 %v1448, 48
      %v1573 = vpop.permute.xlu0 %1572
      %1574 = vrot.lane.b32.xlu0 %v1449, 48
      %v1575 = vpop.permute.xlu0 %1574
      %1576 = vrot.lane.b32.xlu0 %v1450, 48
      %v1577 = vpop.permute.xlu0 %1576
      %1578 = vrot.lane.b32.xlu0 %v1451, 48
      %v1579 = vpop.permute.xlu0 %1578
      %1580 = vrot.lane.b32.xlu0 %v1452, 48
      %v1581 = vpop.permute.xlu0 %1580
      %1582 = vrot.lane.b32.xlu0 %v1453, 48
      %v1583 = vpop.permute.xlu0 %1582
      %1584 = vrot.lane.b32.xlu0 %v1454, 48
      %v1585 = vpop.permute.xlu0 %1584
      %1586 = vrot.lane.b32.xlu0 %v1455, 48
      %v1587 = vpop.permute.xlu0 %1586
      %1588 = vrot.lane.b32.xlu0 %v1456, 48
      %v1589 = vpop.permute.xlu0 %1588
      %1590 = vrot.lane.b32.xlu0 %v1457, 48
      %v1591 = vpop.permute.xlu0 %1590
      %1592 = vrot.lane.b32.xlu0 %v1458, 48
      %v1593 = vpop.permute.xlu0 %1592
      %1594 = vrot.lane.b32.xlu0 %v1459, 48
      %v1595 = vpop.permute.xlu0 %1594
      %1596 = vrot.lane.b32.xlu0 %v1460, 48
      %v1597 = vpop.permute.xlu0 %1596
      %1598 = vrot.lane.b32.xlu0 %v1461, 48
      %v1599 = vpop.permute.xlu0 %1598
      %1600 = vrot.lane.b32.xlu0 %v1462, 48
      %v1601 = vpop.permute.xlu0 %1600
      %1602 = vrot.lane.b32.xlu0 %v1463, 48
      %v1603 = vpop.permute.xlu0 %1602
      %1604 = vrot.lane.b32.xlu0 %v1464, 48
      %v1605 = vpop.permute.xlu0 %1604
      %1606 = vrot.lane.b32.xlu0 %v1465, 48
      %v1607 = vpop.permute.xlu0 %1606
      %1608 = vrot.lane.b32.xlu0 %v1466, 48
      %v1609 = vpop.permute.xlu0 %1608
      %1610 = vrot.lane.b32.xlu0 %v1467, 48
      %v1611 = vpop.permute.xlu0 %1610
      %vm1612 = vcmask 195584
      %v1615 = vsel %vm1612, %v1299, %v1493
      %v1618 = vsel %vm1612, %v1300, %v1495
      %v1621 = vsel %vm1612, %v1301, %v1497
      %v1624 = vsel %vm1612, %v1302, %v1499
      %v1627 = vsel %vm1612, %v1303, %v1501
      %v1630 = vsel %vm1612, %v1304, %v1503
      %v1633 = vsel %vm1612, %v1305, %v1505
      %v1636 = vsel %vm1612, %v1306, %v1507
      %v1639 = vsel %vm1612, %v1307, %v1509
      %v1642 = vsel %vm1612, %v1308, %v1511
      %v1645 = vsel %vm1612, %v1309, %v1513
      %v1648 = vsel %vm1612, %v1310, %v1515
      %v1651 = vsel %vm1612, %v1311, %v1517
      %v1654 = vsel %vm1612, %v1312, %v1519
      %v1657 = vsel %vm1612, %v1313, %v1521
      %v1660 = vsel %vm1612, %v1314, %v1523
      %v1663 = vsel %vm1612, %v1315, %v1525
      %v1666 = vsel %vm1612, %v1316, %v1527
      %v1669 = vsel %vm1612, %v1317, %v1529
      %v1672 = vsel %vm1612, %v1318, %v1531
      %v1675 = vsel %vm1612, %v1319, %v1533
      %v1678 = vsel %vm1612, %v1320, %v1535
      %v1681 = vsel %vm1612, %v1321, %v1537
      %v1684 = vsel %vm1612, %v1322, %v1539
      %vm1685 = vcmask 392192
      %v1687 = vsel %vm1685, %v1615, %v1565
      %v1689 = vsel %vm1685, %v1618, %v1567
      %v1691 = vsel %vm1685, %v1621, %v1569
      %v1693 = vsel %vm1685, %v1624, %v1571
      %v1695 = vsel %vm1685, %v1627, %v1573
      %v1697 = vsel %vm1685, %v1630, %v1575
      %v1699 = vsel %vm1685, %v1633, %v1577
      %v1701 = vsel %vm1685, %v1636, %v1579
      %v1703 = vsel %vm1685, %v1639, %v1581
      %v1705 = vsel %vm1685, %v1642, %v1583
      %v1707 = vsel %vm1685, %v1645, %v1585
      %v1709 = vsel %vm1685, %v1648, %v1587
      %v1711 = vsel %vm1685, %v1651, %v1589
      %v1713 = vsel %vm1685, %v1654, %v1591
      %v1715 = vsel %vm1685, %v1657, %v1593
      %v1717 = vsel %vm1685, %v1660, %v1595
      %v1719 = vsel %vm1685, %v1663, %v1597
      %v1721 = vsel %vm1685, %v1666, %v1599
      %v1723 = vsel %vm1685, %v1669, %v1601
      %v1725 = vsel %vm1685, %v1672, %v1603
      %v1727 = vsel %vm1685, %v1675, %v1605
      %v1729 = vsel %vm1685, %v1678, %v1607
      %v1731 = vsel %vm1685, %v1681, %v1609
      %v1733 = vsel %vm1685, %v1684, %v1611
      %v1734 = vld [vmem:[%s4] sm:$0xf]
      %v1735 = vld [vmem:[%s4 + $0x4] sm:$0xf]
      %v1736 = vld [vmem:[%s4 + $0x8] sm:$0xf]
      %v1737 = vld [vmem:[%s4 + $0xc] sm:$0xf]
      %v1738 = vld [vmem:[%s4 + $0x10] sm:$0xf]
      %v1739 = vld [vmem:[%s4 + $0x14] sm:$0xf]
      %v1740 = vld [vmem:[%s4 + $0x18] sm:$0xf]
      %v1741 = vld [vmem:[%s4 + $0x1c] sm:$0xf]
      %v1742 = vld [vmem:[%s4 + $0x20] sm:$0xf]
      %v1752 = vunpack.c.l.b16 %v1734
      %v1753 = vunpack.c.l.b16 %v1735
      %v1754 = vunpack.c.l.b16 %v1736
      %v1755 = vunpack.c.l.b16 %v1737
      %v1756 = vunpack.c.l.b16 %v1738
      %v1757 = vunpack.c.l.b16 %v1739
      %v1758 = vunpack.c.l.b16 %v1740
      %v1759 = vunpack.c.l.b16 %v1741
      %v1760 = vunpack.c.l.b16 %v1742
      %v1761 = vpack.c.b16 %v1753, %v1752
      %v1762 = vpack.c.b16 %v1755, %v1754
      %v1763 = vpack.c.b16 %v1757, %v1756
      %v1764 = vpack.c.b16 %v1759, %v1758
      %v1765 = vpack.c.b16 %v1760, %v1760
      %vm1770 = vcmask 588800
      %v1771 = vsel %vm1770, %v1687, 0
      %v1773 = vsel %vm1770, %v1689, 0
      %v1775 = vsel %vm1770, %v1691, 0
      %v1777 = vsel %vm1770, %v1693, 0
      %v1779 = vsel %vm1770, %v1695, 0
      %v1781 = vsel %vm1770, %v1697, 0
      %v1783 = vsel %vm1770, %v1699, 0
      %v1785 = vsel %vm1770, %v1701, 0
      %v1787 = vsel %vm1770, %v1703, 0
      %v1789 = vsel %vm1770, %v1705, 0
      %v1791 = vsel %vm1770, %v1707, 0
      %v1793 = vsel %vm1770, %v1709, 0
      %v1795 = vsel %vm1770, %v1711, 0
      %v1797 = vsel %vm1770, %v1713, 0
      %v1799 = vsel %vm1770, %v1715, 0
      %v1801 = vsel %vm1770, %v1717, 0
      %v1803 = vsel %vm1770, %v1719, 0
      %v1805 = vsel %vm1770, %v1721, 0
      %v1807 = vsel %vm1770, %v1723, 0
      %v1809 = vsel %vm1770, %v1725, 0
      %v1811 = vsel %vm1770, %v1727, 0
      %v1813 = vsel %vm1770, %v1729, 0
      %v1815 = vsel %vm1770, %v1731, 0
      %v1817 = vsel %vm1770, %v1733, 0
      %vm1819 = vcmask 1043456
      %v1821 = vsel %vm1819, %v1765, 0
      %1823 = vmatprep.subr.bf16.mxu0 0
      %1824 = vmatpush1.bf16.msra.mxu0 %v1761
      %1825 = vmatprep.subr.bf16.mxu0 0
      %1826 = vmatpush1.bf16.msra.mxu0 %v1762
      %1827 = vmatprep.subr.bf16.mxu0 0
      %1828 = vmatpush1.bf16.msra.mxu0 %v1763
      %1829 = vmatprep.subr.bf16.mxu0 0
      %1830 = vmatpush1.bf16.msra.mxu0 %v1764
      %1831 = vmatprep.subr.bf16.mxu0 0
      %1832 = vmatpush1.bf16.msra.mxu0 %v1821
      %1833 = vmatprep.subr.bf16.mxu0 0
      %1834 = vmatpush1.bf16.msra.mxu0 0
      %1835 = vmatprep.subr.bf16.mxu0 0
      %1836 = vmatpush1.bf16.msra.mxu0 0
      %1837 = vmatprep.subr.bf16.mxu0 0
      %1838 = vmatpush1.bf16.msra.mxu0 0
      %1839 = vmatprep.subr.bf16.mxu0 0
      %1840 = vmatpush1.bf16.msra.mxu0 0
      %1841 = vmatprep.subr.bf16.mxu0 0
      %1842 = vmatpush1.bf16.msra.mxu0 0
      %1843 = vmatprep.subr.bf16.mxu0 0
      %1844 = vmatpush1.bf16.msra.mxu0 0
      %1845 = vmatprep.subr.bf16.mxu0 0
      %1846 = vmatpush1.bf16.msra.mxu0 0
      %1847 = vmatprep.subr.bf16.mxu0 0
      %1848 = vmatpush1.bf16.msra.mxu0 0
      %1849 = vmatprep.subr.bf16.mxu0 0
      %1850 = vmatpush1.bf16.msra.mxu0 0
      %1851 = vmatprep.subr.bf16.mxu0 0
      %1852 = vmatpush1.bf16.msra.mxu0 0
      %1853 = vmatprep.subr.bf16.mxu0 0
      %1854 = vmatpush1.bf16.msra.mxu0 0
      %1855 = vmatprep.mubr.bf16.mxu0 0
      %1856 = vmatmul.mubr.bf16.gmra.mrb[0].mxu0 %v1771
      %v1857 = vpop.f32.mrb[0].mxu0
      %v1858 = vadd.f32 0.0, %v1857
      %v1859 = vpop.f32.mrb[0].mxu0
      %v1860 = vpop.f32.mrb[0].mxu0
      %v1861 = vadd.f32 0.0, %v1860
      %v1862 = vpop.f32.mrb[0].mxu0
      %1863 = vmatprep.mubr.bf16.mxu0 0
      %1864 = vmatmul.mubr.bf16.gmra.mrb[0].mxu0 %v1773
      %v1865 = vpop.f32.mrb[0].mxu0
      %v1866 = vpop.f32.mrb[0].mxu0
      %v1867 = vpop.f32.mrb[0].mxu0
      %v1868 = vadd.f32 0.0, %v1867
      %v1869 = vpop.f32.mrb[0].mxu0
      %1870 = vmatprep.mubr.bf16.mxu0 0
      %1871 = vmatmul.mubr.bf16.gmra.mrb[0].mxu0 %v1775
      %v1872 = vpop.f32.mrb[0].mxu0
      %v1873 = vadd.f32 0.0, %v1872
      %v1874 = vpop.f32.mrb[0].mxu0
      %v1875 = vpop.f32.mrb[0].mxu0
      %v1876 = vpop.f32.mrb[0].mxu0
      %1877 = vmatprep.mubr.bf16.mxu0 0
      %1878 = vmatmul.mubr.bf16.gmra.mrb[0].mxu0 %v1777
      %v1879 = vpop.f32.mrb[0].mxu0
      %v1880 = vadd.f32 0.0, %v1879
      %v1881 = vpop.f32.mrb[0].mxu0
      %v1882 = vpop.f32.mrb[0].mxu0
      %v1883 = vadd.f32 0.0, %v1882
      %v1884 = vpop.f32.mrb[0].mxu0
      %1885 = vmatprep.mubr.bf16.mxu0 0
      %1886 = vmatmul.mubr.bf16.gmra.mrb[0].mxu0 %v1779
      %v1887 = vpop.f32.mrb[0].mxu0
      %v1888 = vpop.f32.mrb[0].mxu0
      %v1889 = vpop.f32.mrb[0].mxu0
      %v1890 = vadd.f32 0.0, %v1889
      %v1891 = vpop.f32.mrb[0].mxu0
      %1892 = vmatprep.mubr.bf16.mxu0 0
      %1893 = vmatmul.mubr.bf16.gmra.mrb[0].mxu0 %v1781
      %v1894 = vpop.f32.mrb[0].mxu0
      %v1895 = vadd.f32 0.0, %v1894
      %v1896 = vpop.f32.mrb[0].mxu0
      %v1897 = vpop.f32.mrb[0].mxu0
      %v1898 = vpop.f32.mrb[0].mxu0
      %1899 = vmatprep.mubr.bf16.mxu0 0
      %1900 = vmatmul.mubr.bf16.gmra.mrb[0].mxu0 %v1783
      %v1901 = vpop.f32.mrb[0].mxu0
      %v1902 = vadd.f32 0.0, %v1901
      %v1903 = vpop.f32.mrb[0].mxu0
      %v1904 = vpop.f32.mrb[0].mxu0
      %v1905 = vadd.f32 0.0, %v1904
      %v1906 = vpop.f32.mrb[0].mxu0
      %1907 = vmatprep.mubr.bf16.mxu0 0
      %1908 = vmatmul.mubr.bf16.gmra.mrb[0].mxu0 %v1785
      %v1909 = vpop.f32.mrb[0].mxu0
      %v1910 = vpop.f32.mrb[0].mxu0
      %v1911 = vpop.f32.mrb[0].mxu0
      %v1912 = vadd.f32 0.0, %v1911
      %v1913 = vpop.f32.mrb[0].mxu0
      %1914 = vmatprep.mubr.bf16.mxu0 0
      %1915 = vmatmul.mubr.bf16.gmra.mrb[0].mxu0 %v1787
      %v1916 = vpop.f32.mrb[0].mxu0
      %v1917 = vadd.f32 0.0, %v1916
      %v1918 = vpop.f32.mrb[0].mxu0
      %v1919 = vpop.f32.mrb[0].mxu0
      %v1920 = vpop.f32.mrb[0].mxu0
      %1921 = vmatprep.mubr.bf16.mxu0 0
      %1922 = vmatmul.mubr.bf16.gmra.mrb[0].mxu0 %v1789
      %v1923 = vpop.f32.mrb[0].mxu0
      %v1924 = vadd.f32 0.0, %v1923
      %v1925 = vpop.f32.mrb[0].mxu0
      %v1926 = vpop.f32.mrb[0].mxu0
      %v1927 = vadd.f32 0.0, %v1926
      %v1928 = vpop.f32.mrb[0].mxu0
      %1929 = vmatprep.mubr.bf16.mxu0 0
      %1930 = vmatmul.mubr.bf16.gmra.mrb[0].mxu0 %v1791
      %v1931 = vpop.f32.mrb[0].mxu0
      %v1932 = vpop.f32.mrb[0].mxu0
      %v1933 = vpop.f32.mrb[0].mxu0
      %v1934 = vadd.f32 0.0, %v1933
      %v1935 = vpop.f32.mrb[0].mxu0
      %1936 = vmatprep.mubr.bf16.mxu0 0
      %1937 = vmatmul.mubr.bf16.gmra.mrb[0].mxu0 %v1793
      %v1938 = vpop.f32.mrb[0].mxu0
      %v1939 = vadd.f32 0.0, %v1938
      %v1940 = vpop.f32.mrb[0].mxu0
      %v1941 = vpop.f32.mrb[0].mxu0
      %v1942 = vpop.f32.mrb[0].mxu0
      %1943 = vmatprep.mubr.bf16.mxu0 0
      %1944 = vmatmul.mubr.bf16.gmra.mrb[0].mxu0 %v1795
      %v1945 = vpop.f32.mrb[0].mxu0
      %v1946 = vadd.f32 0.0, %v1945
      %v1947 = vpop.f32.mrb[0].mxu0
      %v1948 = vpop.f32.mrb[0].mxu0
      %v1949 = vadd.f32 0.0, %v1948
      %v1950 = vpop.f32.mrb[0].mxu0
      %1951 = vmatprep.mubr.bf16.mxu0 0
      %1952 = vmatmul.mubr.bf16.gmra.mrb[0].mxu0 %v1797
      %v1953 = vpop.f32.mrb[0].mxu0
      %v1954 = vpop.f32.mrb[0].mxu0
      %v1955 = vpop.f32.mrb[0].mxu0
      %v1956 = vadd.f32 0.0, %v1955
      %v1957 = vpop.f32.mrb[0].mxu0
      %1958 = vmatprep.mubr.bf16.mxu0 0
      %1959 = vmatmul.mubr.bf16.gmra.mrb[0].mxu0 %v1799
      %v1960 = vpop.f32.mrb[0].mxu0
      %v1961 = vadd.f32 0.0, %v1960
      %v1962 = vpop.f32.mrb[0].mxu0
      %v1963 = vpop.f32.mrb[0].mxu0
      %v1964 = vpop.f32.mrb[0].mxu0
      %1965 = vmatprep.mubr.bf16.mxu0 0
      %1966 = vmatmul.mubr.bf16.gmra.mrb[0].mxu0 %v1801
      %v1967 = vpop.f32.mrb[0].mxu0
      %v1968 = vadd.f32 0.0, %v1967
      %v1969 = vpop.f32.mrb[0].mxu0
      %v1970 = vpop.f32.mrb[0].mxu0
      %v1971 = vadd.f32 0.0, %v1970
      %v1972 = vpop.f32.mrb[0].mxu0
      %1973 = vmatprep.mubr.bf16.mxu0 0
      %1974 = vmatmul.mubr.bf16.gmra.mrb[0].mxu0 %v1803
      %v1975 = vpop.f32.mrb[0].mxu0
      %v1976 = vpop.f32.mrb[0].mxu0
      %v1977 = vpop.f32.mrb[0].mxu0
      %v1978 = vadd.f32 0.0, %v1977
      %v1979 = vpop.f32.mrb[0].mxu0
      %1980 = vmatprep.mubr.bf16.mxu0 0
      %1981 = vmatmul.mubr.bf16.gmra.mrb[0].mxu0 %v1805
      %v1982 = vpop.f32.mrb[0].mxu0
      %v1983 = vadd.f32 0.0, %v1982
      %v1984 = vpop.f32.mrb[0].mxu0
      %v1985 = vpop.f32.mrb[0].mxu0
      %v1986 = vpop.f32.mrb[0].mxu0
      %1987 = vmatprep.mubr.bf16.mxu0 0
      %1988 = vmatmul.mubr.bf16.gmra.mrb[0].mxu0 %v1807
      %v1989 = vpop.f32.mrb[0].mxu0
      %v1990 = vadd.f32 0.0, %v1989
      %v1991 = vpop.f32.mrb[0].mxu0
      %v1992 = vpop.f32.mrb[0].mxu0
      %v1993 = vadd.f32 0.0, %v1992
      %v1994 = vpop.f32.mrb[0].mxu0
      %1995 = vmatprep.mubr.bf16.mxu0 0
      %1996 = vmatmul.mubr.bf16.gmra.mrb[0].mxu0 %v1809
      %v1997 = vpop.f32.mrb[0].mxu0
      %v1998 = vpop.f32.mrb[0].mxu0
      %v1999 = vpop.f32.mrb[0].mxu0
      %v2000 = vadd.f32 0.0, %v1999
      %v2001 = vpop.f32.mrb[0].mxu0
      %2002 = vmatprep.mubr.bf16.mxu0 0
      %2003 = vmatmul.mubr.bf16.gmra.mrb[0].mxu0 %v1811
      %v2004 = vpop.f32.mrb[0].mxu0
      %v2005 = vadd.f32 0.0, %v2004
      %v2006 = vpop.f32.mrb[0].mxu0
      %v2007 = vpop.f32.mrb[0].mxu0
      %v2008 = vpop.f32.mrb[0].mxu0
      %2009 = vmatprep.mubr.bf16.mxu0 0
      %2010 = vmatmul.mubr.bf16.gmra.mrb[0].mxu0 %v1813
      %v2011 = vpop.f32.mrb[0].mxu0
      %v2012 = vadd.f32 0.0, %v2011
      %v2013 = vpop.f32.mrb[0].mxu0
      %v2014 = vpop.f32.mrb[0].mxu0
      %v2015 = vadd.f32 0.0, %v2014
      %v2016 = vpop.f32.mrb[0].mxu0
      %2017 = vmatprep.mubr.bf16.mxu0 0
      %2018 = vmatmul.mubr.bf16.gmra.mrb[0].mxu0 %v1815
      %v2019 = vpop.f32.mrb[0].mxu0
      %v2020 = vpop.f32.mrb[0].mxu0
      %v2021 = vpop.f32.mrb[0].mxu0
      %v2022 = vadd.f32 0.0, %v2021
      %v2023 = vpop.f32.mrb[0].mxu0
      %2024 = vmatprep.mubr.bf16.mxu0 0
      %2025 = vmatmul.mubr.bf16.gmra.mrb[0].mxu0 %v1817
      %v2026 = vpop.f32.mrb[0].mxu0
      %v2027 = vadd.f32 0.0, %v2026
      %v2028 = vpop.f32.mrb[0].mxu0
      %v2029 = vpop.f32.mrb[0].mxu0
      %v2030 = vpop.f32.mrb[0].mxu0
      %2031 = vdwg.mxu0
      %v2032 = vld [vmem:[%s5] sm:$0x1]
      %v2034 = vlaneseq
      %v2035 = vshrl.u32 %v2034, 7
      %v2036 = vsub.s32 0, %v2035
      %v2037 = vrot.slane %v2032, %v2036
      %v2039 = vmul.f32 %v1858, %v2037
      %v2040 = vmul.f32 %v1861, %v2037
      %v2041 = vmul.f32 %v1868, %v2037
      %v2042 = vmul.f32 %v1873, %v2037
      %v2043 = vmul.f32 %v1880, %v2037
      %v2044 = vmul.f32 %v1883, %v2037
      %v2045 = vmul.f32 %v1890, %v2037
      %v2046 = vmul.f32 %v1895, %v2037
      %v2047 = vmul.f32 %v1902, %v2037
      %v2048 = vmul.f32 %v1905, %v2037
      %v2049 = vmul.f32 %v1912, %v2037
      %v2050 = vmul.f32 %v1917, %v2037
      %v2051 = vmul.f32 %v1924, %v2037
      %v2052 = vmul.f32 %v1927, %v2037
      %v2053 = vmul.f32 %v1934, %v2037
      %v2054 = vmul.f32 %v1939, %v2037
      %v2055 = vmul.f32 %v1946, %v2037
      %v2056 = vmul.f32 %v1949, %v2037
      %v2057 = vmul.f32 %v1956, %v2037
      %v2058 = vmul.f32 %v1961, %v2037
      %v2059 = vmul.f32 %v1968, %v2037
      %v2060 = vmul.f32 %v1971, %v2037
      %v2061 = vmul.f32 %v1978, %v2037
      %v2062 = vmul.f32 %v1983, %v2037
      %v2063 = vmul.f32 %v1990, %v2037
      %v2064 = vmul.f32 %v1993, %v2037
      %v2065 = vmul.f32 %v2000, %v2037
      %v2066 = vmul.f32 %v2005, %v2037
      %v2067 = vmul.f32 %v2012, %v2037
      %v2068 = vmul.f32 %v2015, %v2037
      %v2069 = vmul.f32 %v2022, %v2037
      %v2070 = vmul.f32 %v2027, %v2037
      %v2071 = vld [vmem:[%s6] sm:$0x1]
      %v2073 = vlaneseq
      %v2074 = vshrl.u32 %v2073, 7
      %v2075 = vsub.s32 0, %v2074
      %v2076 = vrot.slane %v2071, %v2075
      %v2078 = vadd.f32 %v2039, %v2076
      %v2079 = vadd.f32 %v2040, %v2076
      %v2080 = vadd.f32 %v2041, %v2076
      %v2081 = vadd.f32 %v2042, %v2076
      %v2082 = vadd.f32 %v2043, %v2076
      %v2083 = vadd.f32 %v2044, %v2076
      %v2084 = vadd.f32 %v2045, %v2076
      %v2085 = vadd.f32 %v2046, %v2076
      %v2086 = vadd.f32 %v2047, %v2076
      %v2087 = vadd.f32 %v2048, %v2076
      %v2088 = vadd.f32 %v2049, %v2076
      %v2089 = vadd.f32 %v2050, %v2076
      %v2090 = vadd.f32 %v2051, %v2076
      %v2091 = vadd.f32 %v2052, %v2076
      %v2092 = vadd.f32 %v2053, %v2076
      %v2093 = vadd.f32 %v2054, %v2076
      %v2094 = vadd.f32 %v2055, %v2076
      %v2095 = vadd.f32 %v2056, %v2076
      %v2096 = vadd.f32 %v2057, %v2076
      %v2097 = vadd.f32 %v2058, %v2076
      %v2098 = vadd.f32 %v2059, %v2076
      %v2099 = vadd.f32 %v2060, %v2076
      %v2100 = vadd.f32 %v2061, %v2076
      %v2101 = vadd.f32 %v2062, %v2076
      %v2102 = vadd.f32 %v2063, %v2076
      %v2103 = vadd.f32 %v2064, %v2076
      %v2104 = vadd.f32 %v2065, %v2076
      %v2105 = vadd.f32 %v2066, %v2076
      %v2106 = vadd.f32 %v2067, %v2076
      %v2107 = vadd.f32 %v2068, %v2076
      %v2108 = vadd.f32 %v2069, %v2076
      %v2109 = vadd.f32 %v2070, %v2076
      %v2110 = vmax.f32 %v2078, 0.0
      %v2111 = vmax.f32 %v2079, 0.0
      %v2112 = vmax.f32 %v2080, 0.0
      %v2113 = vmax.f32 %v2081, 0.0
      %v2114 = vmax.f32 %v2082, 0.0
      %v2115 = vmax.f32 %v2083, 0.0
      %v2116 = vmax.f32 %v2084, 0.0
      %v2117 = vmax.f32 %v2085, 0.0
      %v2118 = vmax.f32 %v2086, 0.0
      %v2119 = vmax.f32 %v2087, 0.0
      %v2120 = vmax.f32 %v2088, 0.0
      %v2121 = vmax.f32 %v2089, 0.0
      %v2122 = vmax.f32 %v2090, 0.0
      %v2123 = vmax.f32 %v2091, 0.0
      %v2124 = vmax.f32 %v2092, 0.0
      %v2125 = vmax.f32 %v2093, 0.0
      %v2126 = vmax.f32 %v2094, 0.0
      %v2127 = vmax.f32 %v2095, 0.0
      %v2128 = vmax.f32 %v2096, 0.0
      %v2129 = vmax.f32 %v2097, 0.0
      %v2130 = vmax.f32 %v2098, 0.0
      %v2131 = vmax.f32 %v2099, 0.0
      %v2132 = vmax.f32 %v2100, 0.0
      %v2133 = vmax.f32 %v2101, 0.0
      %v2134 = vmax.f32 %v2102, 0.0
      %v2135 = vmax.f32 %v2103, 0.0
      %v2136 = vmax.f32 %v2104, 0.0
      %v2137 = vmax.f32 %v2105, 0.0
      %v2138 = vmax.f32 %v2106, 0.0
      %v2139 = vmax.f32 %v2107, 0.0
      %v2140 = vmax.f32 %v2108, 0.0
      %v2141 = vmax.f32 %v2109, 0.0
      %2142 = vst.msk [vmem:[%s278] sm:$0xff] %vm354, %v2110
      %2143 = vst.msk [vmem:[%s278 + $0x8] sm:$0xff] %vm354, %v2111
      %2144 = vst.msk [vmem:[%s278 + $0x10] sm:$0xff] %vm354, %v2112
      %2145 = vst.msk [vmem:[%s278 + $0x18] sm:$0xff] %vm354, %v2113
      %2146 = vst.msk [vmem:[%s278 + $0x20] sm:$0xff] %vm354, %v2114
      %2147 = vst.msk [vmem:[%s278 + $0x28] sm:$0xff] %vm354, %v2115
      %2148 = vst.msk [vmem:[%s278 + $0x30] sm:$0xff] %vm354, %v2116
      %2149 = vst.msk [vmem:[%s278 + $0x38] sm:$0xff] %vm354, %v2117
      %2150 = vst.msk [vmem:[%s278 + $0x40] sm:$0xff] %vm354, %v2118
      %2151 = vst.msk [vmem:[%s278 + $0x48] sm:$0xff] %vm354, %v2119
      %2152 = vst.msk [vmem:[%s278 + $0x50] sm:$0xff] %vm354, %v2120
      %2153 = vst.msk [vmem:[%s278 + $0x58] sm:$0xff] %vm354, %v2121
      %2154 = vst.msk [vmem:[%s278 + $0x60] sm:$0xff] %vm354, %v2122
      %2155 = vst.msk [vmem:[%s278 + $0x68] sm:$0xff] %vm354, %v2123
      %2156 = vst.msk [vmem:[%s278 + $0x70] sm:$0xff] %vm354, %v2124
      %2157 = vst.msk [vmem:[%s278 + $0x78] sm:$0xff] %vm354, %v2125
      %2158 = vst.msk [vmem:[%s278 + $0x80] sm:$0xff] %vm354, %v2126
      %2159 = vst.msk [vmem:[%s278 + $0x88] sm:$0xff] %vm354, %v2127
      %2160 = vst.msk [vmem:[%s278 + $0x90] sm:$0xff] %vm354, %v2128
      %2161 = vst.msk [vmem:[%s278 + $0x98] sm:$0xff] %vm354, %v2129
      %2162 = vst.msk [vmem:[%s278 + $0xa0] sm:$0xff] %vm354, %v2130
      %2163 = vst.msk [vmem:[%s278 + $0xa8] sm:$0xff] %vm354, %v2131
      %2164 = vst.msk [vmem:[%s278 + $0xb0] sm:$0xff] %vm354, %v2132
      %2165 = vst.msk [vmem:[%s278 + $0xb8] sm:$0xff] %vm354, %v2133
      %2166 = vst.msk [vmem:[%s278 + $0xc0] sm:$0xff] %vm354, %v2134
      %2167 = vst.msk [vmem:[%s278 + $0xc8] sm:$0xff] %vm354, %v2135
      %2168 = vst.msk [vmem:[%s278 + $0xd0] sm:$0xff] %vm354, %v2136
      %2169 = vst.msk [vmem:[%s278 + $0xd8] sm:$0xff] %vm354, %v2137
      %2170 = vst.msk [vmem:[%s278 + $0xe0] sm:$0xff] %vm354, %v2138
      %2171 = vst.msk [vmem:[%s278 + $0xe8] sm:$0xff] %vm354, %v2139
      %2172 = vst.msk [vmem:[%s278 + $0xf0] sm:$0xff] %vm354, %v2140
      %2173 = vst.msk [vmem:[%s278 + $0xf8] sm:$0xff] %vm354, %v2141
      %p2174 = scmp.lt.s32.totalorder %s18, 1
      %s2175 = scalar_select %p2174, %s18, 1
      %s2176 = smul.addr %s2175, 32
      %s2177 = smul.addr %s2176, 8
      %s2178 = scalar_lea.vmem %s7, %s2177
      // Predicated region
      $region49: #{tpu_custom_call.1} parent=47 // pred_check
        %p2179 = pneg %p188
      $region50: #{tpu_custom_call.1} parent=47 // pred_check_branch
        %2181 = sbr.rel (%p2179) target = $region52
      $region51: #{tpu_custom_call.1} parent=47 // pred_region
        _
      $region52: #{tpu_custom_call.1} parent=47 // pred_fallthru
        _
    $region48: #{tpu_custom_call.1} parent=5 // pred_fallthru
      _
    %p2182 = scmp.le.s32.totalorder 2, %s13
    // Predicated region
    $region53: #{tpu_custom_call.1} parent=5 // pred_check
      %p2183 = pneg %p2182
    $region54: #{tpu_custom_call.1} parent=5 // pred_check_branch
      %2185 = sbr.rel (%p2183) target = $region56
    $region55: #{tpu_custom_call.1} parent=5 // pred_region
      %s2186 = ssub.s32 %s13, 2
      // Predicated region
      $region57: #{tpu_custom_call.1} parent=55 // pred_check
        %p2187 = pneg %p194
      $region58: #{tpu_custom_call.1} parent=55 // pred_check_branch
        %2189 = sbr.rel (%p2187) target = $region60
      $region59: #{tpu_custom_call.1} parent=55 // pred_region
        %p2190 = scmp.lt.s32.totalorder %s19, 1
        %s2191 = scalar_select %p2190, %s19, 1
        %s2192 = smul.addr %s2191, 32
        %s2193 = smul.addr %s2192, 8
        %s2194 = scalar_lea.vmem %s7, %s2193
      $region60: #{tpu_custom_call.1} parent=55 // pred_fallthru
        _
    $region56: #{tpu_custom_call.1} parent=5 // pred_fallthru
      _
  $region6: #{tpu_custom_call.1} parent=0 // loop_footer
    %s17 = sadd.s32 1, %s13
  $region7: #{tpu_custom_call.1} parent=0 // loop_footer_branch
    %12 = sbr.rel target = $region3
  $region8: #{tpu_custom_call.1} parent=0 // loop_exit
    _

</llo_original>
